<compile_context>
chip_gen: v5e
topology: v5e:2x2
jax: 0.10.0
libtpu: 0.0.40
codegen_flags: <defaults>
</compile_context>

<pallas_src>
import math

import jax
import jax.numpy as jnp
import numpy as np
from jax.experimental import pallas as pl
from jax.experimental.pallas import tpu as pltpu

LANE = 128      # TPU lane width: last dim of every block padded to a multiple
SUBLANE = 8     # row tiles must be a multiple of this

_LAYERS = ("enc_1", "enc_2", "z", "dec_1", "dec_2", "x_bar")


def _round_up(x, m):
    return ((x + m - 1) // m) * m


def _pad2d(a, rows, cols):
    r, c = a.shape
    return jnp.pad(a, ((0, rows - r), (0, cols - c)))


def _pick_row_tile(n):
    """Row tile: as large as possible (<=256) while keeping >=4 grid steps."""
    npad8 = _round_up(max(n, SUBLANE), SUBLANE)
    rt = min(256, npad8)
    rt = _round_up(rt, SUBLANE)
    # keep >= 4 grid steps (>= 2 per v7x TensorCore) so the pipeline has work
    # to prefetch behind, unless the batch is too small for that to matter
    while rt > 32 and (npad8 + rt - 1) // rt < 4:
        rt //= 2
    return max(SUBLANE, _round_up(rt, SUBLANE))


def _vmem_limit_bytes(row_tile, din_pad, layer_pads, out_pads, out_itemsize,
                      x_buffers):
    """Shape-derived VMEM budget, clamped to the chip's physical capacity."""
    # Weights + biases are single-buffered (constant index_map + Buffered(1));
    # a (1, fo) f32 bias block still occupies a full 8-sublane VMEM tile.
    w_bytes = sum(fi * fo * 2 + SUBLANE * fo * 4 for fi, fo in layer_pads)
    # x row tile streams as bf16, multi-buffered.
    x_bytes = x_buffers * row_tile * din_pad * 2
    # four outputs, double-buffered.
    o_bytes = 2 * sum(row_tile * d * out_itemsize for d in out_pads)
    # f32 activation temporaries inside the kernel body (h1..d2, matmul temps).
    act_bytes = 2 * sum(row_tile * fo * 4 for _, fo in layer_pads)
    needed = w_bytes + x_bytes + o_bytes + act_bytes

    phys = None
    try:
        phys = getattr(pltpu.get_tpu_info(), "vmem_capacity_bytes", None)
    except Exception:
        phys = None
    if not phys:
        phys = 64 * 1024 * 1024          # assume the smallest per-core VMEM (v7x)
    # Leave >=12 MiB for compiler-internal scratch; never ask for more than
    # ~100 MiB even on 128 MiB parts.
    ceiling = min(phys - 12 * 1024 * 1024, 100 * 1024 * 1024)
    # TODO(synk): if W1/Wxb alone exceed `ceiling` (very wide n_input), tile the
    # first layer's K dim / last layer's N dim instead of relying on residency.
    limit = min(needed + 16 * 1024 * 1024, ceiling)
    return int(max(limit, 32 * 1024 * 1024))


# ---------------------------------------------------------------------------
# Fused AE forward kernel: one grid step pushes one row-tile of x through all
# six Linear(+ReLU) layers; enc_h1 / enc_h2 / z / x_bar are written out.
# ---------------------------------------------------------------------------
def _ae_fused_kernel(x_ref,
                     w1_ref, b1_ref, w2_ref, b2_ref, wz_ref, bz_ref,
                     wd1_ref, bd1_ref, wd2_ref, bd2_ref, wxb_ref, bxb_ref,
                     xbar_ref, h1_ref, h2_ref, z_ref):

    def dense(act, w_ref, b_ref, relu):
        # bf16 MXU operands, f32 accumulate; bias add / ReLU on the VPU in f32.
        y = jnp.dot(act.astype(jnp.bfloat16), w_ref[...],
                    preferred_element_type=jnp.float32)
        y = y + b_ref[...]
        if relu:
            y = jnp.maximum(y, 0.0)
        return y

    x = x_ref[...]                                    # (tm, n_input_pad) bf16
    h1 = dense(x, w1_ref, b1_ref, relu=True)
    h1_ref[...] = h1.astype(h1_ref.dtype)
    h2 = dense(h1, w2_ref, b2_ref, relu=True)
    h2_ref[...] = h2.astype(h2_ref.dtype)
    z = dense(h2, wz_ref, bz_ref, relu=False)
    z_ref[...] = z.astype(z_ref.dtype)
    d1 = dense(z, wd1_ref, bd1_ref, relu=True)        # decoder intermediates
    d2 = dense(d1, wd2_ref, bd2_ref, relu=True)       # never leave the kernel
    xbar_ref[...] = dense(d2, wxb_ref, bxb_ref, relu=False).astype(xbar_ref.dtype)


# ---------------------------------------------------------------------------
# One-time parameter preparation: lane-pad + cast to bf16 OUTSIDE the per-call
# forward so repeated forwards do not re-pad/re-convert weights in HBM.
# ---------------------------------------------------------------------------
def prepare_ae_params(params):
    """Returns (prepared_params, out_dims) with padded bf16 W / padded f32 b."""
    prepared = {}
    for name in _LAYERS:
        fi, fo = params[f"{name}_w"].shape
        fi_p, fo_p = _round_up(fi, LANE), _round_up(fo, LANE)
        prepared[f"{name}_w"] = _pad2d(
            params[f"{name}_w"].astype(jnp.float32), fi_p, fo_p
        ).astype(jnp.bfloat16)
        prepared[f"{name}_b"] = _pad2d(
            params[f"{name}_b"].astype(jnp.float32), 1, fo_p)
    # logical output widths for (x_bar, enc_h1, enc_h2, z) unpadding
    out_dims = tuple(int(params[f"{n}_w"].shape[1])
                     for n in ("x_bar", "enc_1", "enc_2", "z"))
    return prepared, out_dims


# ---------------------------------------------------------------------------
# Wrapper: padding of x, BlockSpecs, single pallas_call, un-padding.
# ---------------------------------------------------------------------------
def ae_forward(prepared, x, *, out_dims, row_tile=None,
               out_dtype=jnp.float32, x_buffers=2):
    """Pallas AE forward. Returns (x_bar, enc_h1, enc_h2, z) in `out_dtype`."""
    n, n_input = x.shape
    din_pad = prepared["enc_1_w"].shape[0]
    assert n_input <= din_pad, "x feature dim exceeds prepared enc_1 weight"

    if row_tile is None:
        row_tile = _pick_row_tile(n)
    row_tile = max(SUBLANE, _round_up(row_tile, SUBLANE))
    npad = _round_up(max(n, row_tile), row_tile)
    grid = (npad // row_tile,)

    # Stream x as bf16 (halves its HBM->VMEM bytes; it is cast to bf16 for the
    # MXU anyway).
    x_pad = _pad2d(x.astype(jnp.bfloat16), npad, din_pad)

    x_spec_kwargs = {}
    if x_buffers != 2:
        # Optional deeper buffering of the one truly streamed operand.
        x_spec_kwargs["pipeline_mode"] = pl.Buffered(x_buffers)
    x_spec = pl.BlockSpec((row_tile, din_pad), lambda i: (i, 0), **x_spec_kwargs)

    flat_params, param_specs, layer_pads = [], [], []
    flops = 0
    param_bytes = 0
    for name in _LAYERS:
        w = prepared[f"{name}_w"]
        b = prepared[f"{name}_b"]
        fi_p, fo_p = w.shape
        layer_pads.append((fi_p, fo_p))
        flat_params += [w, b]
        # Constant index_map -> fetched once, stays VMEM-resident; Buffered(1)
        # avoids wasting a second (double) buffer on never-refetched blocks.
        param_specs += [
            pl.BlockSpec((fi_p, fo_p), lambda i: (0, 0),
                         pipeline_mode=pl.Buffered(1)),
            pl.BlockSpec((1, fo_p), lambda i: (0, 0),
                         pipeline_mode=pl.Buffered(1)),
        ]
        flops += 2 * npad * fi_p * fo_p
        param_bytes += fi_p * fo_p * 2 + fo_p * 4

    out_itemsize = jnp.dtype(out_dtype).itemsize
    out_names = ("x_bar", "enc_1", "enc_2", "z")
    out_pads = [prepared[f"{nm}_w"].shape[1] for nm in out_names]
    out_shape = tuple(jax.ShapeDtypeStruct((npad, d), out_dtype)
                      for d in out_pads)
    out_specs = [pl.BlockSpec((row_tile, d), lambda i: (i, 0)) for d in out_pads]

    bytes_accessed = (x_pad.size * 2 + param_bytes
                      + sum(npad * d * out_itemsize for d in out_pads))
    vmem_limit = _vmem_limit_bytes(row_tile, din_pad, layer_pads, out_pads,
                                   out_itemsize, x_buffers)

    fused = pl.pallas_call(
        _ae_fused_kernel,
        grid=grid,
        in_specs=[x_spec] + param_specs,
        out_specs=out_specs,
        out_shape=out_shape,
        compiler_params=pltpu.CompilerParams(
            # row tiles are independent -> shard across v7x's 2 TensorCores
            dimension_semantics=("parallel",),
            vmem_limit_bytes=vmem_limit,
        ),
        cost_estimate=pl.CostEstimate(
            flops=flops, transcendentals=0, bytes_accessed=bytes_accessed),
    )(x_pad, *flat_params)

    x_bar_p, h1_p, h2_p, z_p = fused
    d_xbar, d_h1, d_h2, d_z = out_dims
    return (x_bar_p[:n, :d_xbar],
            h1_p[:n, :d_h1],
            h2_p[:n, :d_h2],
            z_p[:n, :d_z])


# ---------------------------------------------------------------------------
# Deterministic synthetic parameters (PyTorch Linear default-style init).
# Weights stored as (in_features, out_features): forward is x @ W + b,
# equivalent to PyTorch's (out, in) storage with x @ W.T + b.
# ---------------------------------------------------------------------------
def init_ae_params(key, n_enc_1, n_enc_2, n_dec_1, n_dec_2, n_input, n_z):
    dims = [
        ("enc_1", n_input, n_enc_1), ("enc_2", n_enc_1, n_enc_2),
        ("z",     n_enc_2, n_z),     ("dec_1", n_z,     n_dec_1),
        ("dec_2", n_dec_1, n_dec_2), ("x_bar", n_dec_2, n_input),
    ]
    p = {}
    for k, (name, fi, fo) in zip(jax.random.split(key, len(dims)), dims):
        kw, kb = jax.random.split(k)
        bound = 1.0 / math.sqrt(fi)
        p[f"{name}_w"] = jax.random.uniform(kw, (fi, fo), jnp.float32, -bound, bound)
        p[f"{name}_b"] = jax.random.uniform(kb, (1, fo), jnp.float32, -bound, bound)
    return p


# ---------------------------------------------------------------------------
# Pure-JAX references.
# ---------------------------------------------------------------------------
def ae_forward_ref_f32(p, x):
    relu = lambda t: jnp.maximum(t, 0.0)
    enc_h1 = relu(x @ p["enc_1_w"] + p["enc_1_b"])
    enc_h2 = relu(enc_h1 @ p["enc_2_w"] + p["enc_2_b"])
    z = enc_h2 @ p["z_w"] + p["z_b"]
    dec_h1 = relu(z @ p["dec_1_w"] + p["dec_1_b"])
    dec_h2 = relu(dec_h1 @ p["dec_2_w"] + p["dec_2_b"])
    x_bar = dec_h2 @ p["x_bar_w"] + p["x_bar_b"]
    return x_bar, enc_h1, enc_h2, z


def ae_forward_ref_bf16(p, x):
    # Mirrors the kernel's numerics: bf16 matmul operands, f32 accumulation.
    def dense(a, w, b, relu):
        y = jnp.dot(a.astype(jnp.bfloat16), w.astype(jnp.bfloat16),
                    preferred_element_type=jnp.float32) + b
        return jnp.maximum(y, 0.0) if relu else y
    enc_h1 = dense(x, p["enc_1_w"], p["enc_1_b"], True)
    enc_h2 = dense(enc_h1, p["enc_2_w"], p["enc_2_b"], True)
    z = dense(enc_h2, p["z_w"], p["z_b"], False)
    dec_h1 = dense(z, p["dec_1_w"], p["dec_1_b"], True)
    dec_h2 = dense(dec_h1, p["dec_2_w"], p["dec_2_b"], True)
    x_bar = dense(dec_h2, p["x_bar_w"], p["x_bar_b"], False)
    return x_bar, enc_h1, enc_h2, z


# ---------------------------------------------------------------------------
if __name__ == "__main__":
    # Small shapes consistent with the module (auto row_tile gives a 2-step
    # parallel row grid here, exercising tiling + resident weights).
    N, n_input = 64, 32
    n_enc_1, n_enc_2 = 32, 16
    n_dec_1, n_dec_2 = 16, 32
    n_z = 8

    key = jax.random.PRNGKey(0)
    kx, kp = jax.random.split(key)
    x = jax.random.normal(kx, (N, n_input), jnp.float32)
    params = init_ae_params(kp, n_enc_1, n_enc_2, n_dec_1, n_dec_2, n_input, n_z)
    # NOTE: the surrounding SDCN code loads pretrained AE weights from disk;
    # here parameters are deterministic synthetic stand-ins.

    # Pad + cast weights ONCE (outside any training/inference loop).
    prepared, out_dims = prepare_ae_params(params)

    fwd = jax.jit(ae_forward,
                  static_argnames=("out_dims", "row_tile", "out_dtype",
                                   "x_buffers"))
    out = jax.block_until_ready(fwd(prepared, x, out_dims=out_dims))

    # Check vs. a reference mirroring the kernel's bf16-operand math.
    for o, r in zip(out, ae_forward_ref_bf16(params, x)):
        np.testing.assert_allclose(np.asarray(o), np.asarray(r),
                                   rtol=1e-2, atol=1e-2)

    # Looser check vs. the pure-f32 (PyTorch-semantics) reference; the only
    # difference is bf16 operand rounding in the MXU matmuls (compounds over
    # the 6 layers -> documented 5e-2 tolerance).
    for o, r in zip(out, ae_forward_ref_f32(params, x)):
        np.testing.assert_allclose(np.asarray(o), np.asarray(r),
                                   rtol=5e-2, atol=5e-2)

    print("KERNEL_OK")
</pallas_src>

<mosaic_0001>
module attributes {stable_mosaic.version = 11 : i64} {
  func.func @_ae_fused_kernel(%arg0: i32, %arg1: memref<32x128xbf16, #tpu.memory_space<vmem>>, %arg2: memref<128x128xbf16, #tpu.memory_space<vmem>>, %arg3: memref<1x128xf32, #tpu.memory_space<vmem>>, %arg4: memref<128x128xbf16, #tpu.memory_space<vmem>>, %arg5: memref<1x128xf32, #tpu.memory_space<vmem>>, %arg6: memref<128x128xbf16, #tpu.memory_space<vmem>>, %arg7: memref<1x128xf32, #tpu.memory_space<vmem>>, %arg8: memref<128x128xbf16, #tpu.memory_space<vmem>>, %arg9: memref<1x128xf32, #tpu.memory_space<vmem>>, %arg10: memref<128x128xbf16, #tpu.memory_space<vmem>>, %arg11: memref<1x128xf32, #tpu.memory_space<vmem>>, %arg12: memref<128x128xbf16, #tpu.memory_space<vmem>>, %arg13: memref<1x128xf32, #tpu.memory_space<vmem>>, %arg14: memref<32x128xf32, #tpu.memory_space<vmem>>, %arg15: memref<32x128xf32, #tpu.memory_space<vmem>>, %arg16: memref<32x128xf32, #tpu.memory_space<vmem>>, %arg17: memref<32x128xf32, #tpu.memory_space<vmem>>) attributes {dimension_semantics = [#tpu.dimension_semantics<parallel>], iteration_bounds = array<i64: 2>, scalar_prefetch = 0 : i64, scratch_operands = 0 : i64, tpu.core_type = #tpu.core_type<tc>, window_params = [{transform_indices = @transform_0, window_bounds = array<i64: 32, 128>}, {pipeline_mode = #tpu.pipeline_mode<synchronous>, transform_indices = @transform_1, window_bounds = array<i64: 128, 128>}, {pipeline_mode = #tpu.pipeline_mode<synchronous>, transform_indices = @transform_2, window_bounds = array<i64: 1, 128>}, {pipeline_mode = #tpu.pipeline_mode<synchronous>, transform_indices = @transform_3, window_bounds = array<i64: 128, 128>}, {pipeline_mode = #tpu.pipeline_mode<synchronous>, transform_indices = @transform_4, window_bounds = array<i64: 1, 128>}, {pipeline_mode = #tpu.pipeline_mode<synchronous>, transform_indices = @transform_5, window_bounds = array<i64: 128, 128>}, {pipeline_mode = #tpu.pipeline_mode<synchronous>, transform_indices = @transform_6, window_bounds = array<i64: 1, 128>}, {pipeline_mode = #tpu.pipeline_mode<synchronous>, transform_indices = @transform_7, window_bounds = array<i64: 128, 128>}, {pipeline_mode = #tpu.pipeline_mode<synchronous>, transform_indices = @transform_8, window_bounds = array<i64: 1, 128>}, {pipeline_mode = #tpu.pipeline_mode<synchronous>, transform_indices = @transform_9, window_bounds = array<i64: 128, 128>}, {pipeline_mode = #tpu.pipeline_mode<synchronous>, transform_indices = @transform_10, window_bounds = array<i64: 1, 128>}, {pipeline_mode = #tpu.pipeline_mode<synchronous>, transform_indices = @transform_11, window_bounds = array<i64: 128, 128>}, {pipeline_mode = #tpu.pipeline_mode<synchronous>, transform_indices = @transform_12, window_bounds = array<i64: 1, 128>}, {transform_indices = @transform_13, window_bounds = array<i64: 32, 128>}, {transform_indices = @transform_14, window_bounds = array<i64: 32, 128>}, {transform_indices = @transform_15, window_bounds = array<i64: 32, 128>}, {transform_indices = @transform_16, window_bounds = array<i64: 32, 128>}]} {
    %c0 = arith.constant 0 : index
    %c0_0 = arith.constant 0 : index
    %0 = vector.load %arg1[%c0, %c0_0] : memref<32x128xbf16, #tpu.memory_space<vmem>>, vector<32x128xbf16>
    %c0_1 = arith.constant 0 : index
    %c0_2 = arith.constant 0 : index
    %1 = vector.load %arg2[%c0_1, %c0_2] : memref<128x128xbf16, #tpu.memory_space<vmem>>, vector<128x128xbf16>
    %cst = arith.constant dense<0.000000e+00> : vector<32x128xf32>
    %2 = tpu.matmul %0, %1, %cst {dimension_numbers = #tpu.dot_dimension_numbers<[1], [0], [0], [1], [0, 0, 1, 1], [], []>} : vector<32x128xbf16>, vector<128x128xbf16>, vector<32x128xf32> -> vector<32x128xf32>
    %c0_3 = arith.constant 0 : index
    %c0_4 = arith.constant 0 : index
    %3 = vector.load %arg3[%c0_3, %c0_4] : memref<1x128xf32, #tpu.memory_space<vmem>>, vector<1x128xf32>
    %4 = vector.broadcast %3 : vector<1x128xf32> to vector<32x128xf32>
    %5 = arith.addf %2, %4 : vector<32x128xf32>
    %cst_5 = arith.constant 0.000000e+00 : f32
    %6 = vector.broadcast %cst_5 : f32 to vector<32x128xf32>
    %7 = arith.maximumf %5, %6 : vector<32x128xf32>
    %c0_6 = arith.constant 0 : index
    %c0_7 = arith.constant 0 : index
    %8 = vector.load %arg15[%c0_6, %c0_7] : memref<32x128xf32, #tpu.memory_space<vmem>>, vector<32x128xf32>
    tpu.vector_store %arg15[%c0_6, %c0_7], %7 {strides = array<i32>} : memref<32x128xf32, #tpu.memory_space<vmem>>, vector<32x128xf32>,
    %9 = arith.truncf %7 : vector<32x128xf32> to vector<32x128xbf16>
    %c0_8 = arith.constant 0 : index
    %c0_9 = arith.constant 0 : index
    %10 = vector.load %arg4[%c0_8, %c0_9] : memref<128x128xbf16, #tpu.memory_space<vmem>>, vector<128x128xbf16>
    %cst_10 = arith.constant dense<0.000000e+00> : vector<32x128xf32>
    %11 = tpu.matmul %9, %10, %cst_10 {dimension_numbers = #tpu.dot_dimension_numbers<[1], [0], [0], [1], [0, 0, 1, 1], [], []>} : vector<32x128xbf16>, vector<128x128xbf16>, vector<32x128xf32> -> vector<32x128xf32>
    %c0_11 = arith.constant 0 : index
    %c0_12 = arith.constant 0 : index
    %12 = vector.load %arg5[%c0_11, %c0_12] : memref<1x128xf32, #tpu.memory_space<vmem>>, vector<1x128xf32>
    %13 = vector.broadcast %12 : vector<1x128xf32> to vector<32x128xf32>
    %14 = arith.addf %11, %13 : vector<32x128xf32>
    %cst_13 = arith.constant 0.000000e+00 : f32
    %15 = vector.broadcast %cst_13 : f32 to vector<32x128xf32>
    %16 = arith.maximumf %14, %15 : vector<32x128xf32>
    %c0_14 = arith.constant 0 : index
    %c0_15 = arith.constant 0 : index
    %17 = vector.load %arg16[%c0_14, %c0_15] : memref<32x128xf32, #tpu.memory_space<vmem>>, vector<32x128xf32>
    tpu.vector_store %arg16[%c0_14, %c0_15], %16 {strides = array<i32>} : memref<32x128xf32, #tpu.memory_space<vmem>>, vector<32x128xf32>,
    %18 = arith.truncf %16 : vector<32x128xf32> to vector<32x128xbf16>
    %c0_16 = arith.constant 0 : index
    %c0_17 = arith.constant 0 : index
    %19 = vector.load %arg6[%c0_16, %c0_17] : memref<128x128xbf16, #tpu.memory_space<vmem>>, vector<128x128xbf16>
    %cst_18 = arith.constant dense<0.000000e+00> : vector<32x128xf32>
    %20 = tpu.matmul %18, %19, %cst_18 {dimension_numbers = #tpu.dot_dimension_numbers<[1], [0], [0], [1], [0, 0, 1, 1], [], []>} : vector<32x128xbf16>, vector<128x128xbf16>, vector<32x128xf32> -> vector<32x128xf32>
    %c0_19 = arith.constant 0 : index
    %c0_20 = arith.constant 0 : index
    %21 = vector.load %arg7[%c0_19, %c0_20] : memref<1x128xf32, #tpu.memory_space<vmem>>, vector<1x128xf32>
    %22 = vector.broadcast %21 : vector<1x128xf32> to vector<32x128xf32>
    %23 = arith.addf %20, %22 : vector<32x128xf32>
    %c0_21 = arith.constant 0 : index
    %c0_22 = arith.constant 0 : index
    %24 = vector.load %arg17[%c0_21, %c0_22] : memref<32x128xf32, #tpu.memory_space<vmem>>, vector<32x128xf32>
    tpu.vector_store %arg17[%c0_21, %c0_22], %23 {strides = array<i32>} : memref<32x128xf32, #tpu.memory_space<vmem>>, vector<32x128xf32>,
    %25 = arith.truncf %23 : vector<32x128xf32> to vector<32x128xbf16>
    %c0_23 = arith.constant 0 : index
    %c0_24 = arith.constant 0 : index
    %26 = vector.load %arg8[%c0_23, %c0_24] : memref<128x128xbf16, #tpu.memory_space<vmem>>, vector<128x128xbf16>
    %cst_25 = arith.constant dense<0.000000e+00> : vector<32x128xf32>
    %27 = tpu.matmul %25, %26, %cst_25 {dimension_numbers = #tpu.dot_dimension_numbers<[1], [0], [0], [1], [0, 0, 1, 1], [], []>} : vector<32x128xbf16>, vector<128x128xbf16>, vector<32x128xf32> -> vector<32x128xf32>
    %c0_26 = arith.constant 0 : index
    %c0_27 = arith.constant 0 : index
    %28 = vector.load %arg9[%c0_26, %c0_27] : memref<1x128xf32, #tpu.memory_space<vmem>>, vector<1x128xf32>
    %29 = vector.broadcast %28 : vector<1x128xf32> to vector<32x128xf32>
    %30 = arith.addf %27, %29 : vector<32x128xf32>
    %cst_28 = arith.constant 0.000000e+00 : f32
    %31 = vector.broadcast %cst_28 : f32 to vector<32x128xf32>
    %32 = arith.maximumf %30, %31 : vector<32x128xf32>
    %33 = arith.truncf %32 : vector<32x128xf32> to vector<32x128xbf16>
    %c0_29 = arith.constant 0 : index
    %c0_30 = arith.constant 0 : index
    %34 = vector.load %arg10[%c0_29, %c0_30] : memref<128x128xbf16, #tpu.memory_space<vmem>>, vector<128x128xbf16>
    %cst_31 = arith.constant dense<0.000000e+00> : vector<32x128xf32>
    %35 = tpu.matmul %33, %34, %cst_31 {dimension_numbers = #tpu.dot_dimension_numbers<[1], [0], [0], [1], [0, 0, 1, 1], [], []>} : vector<32x128xbf16>, vector<128x128xbf16>, vector<32x128xf32> -> vector<32x128xf32>
    %c0_32 = arith.constant 0 : index
    %c0_33 = arith.constant 0 : index
    %36 = vector.load %arg11[%c0_32, %c0_33] : memref<1x128xf32, #tpu.memory_space<vmem>>, vector<1x128xf32>
    %37 = vector.broadcast %36 : vector<1x128xf32> to vector<32x128xf32>
    %38 = arith.addf %35, %37 : vector<32x128xf32>
    %cst_34 = arith.constant 0.000000e+00 : f32
    %39 = vector.broadcast %cst_34 : f32 to vector<32x128xf32>
    %40 = arith.maximumf %38, %39 : vector<32x128xf32>
    %41 = arith.truncf %40 : vector<32x128xf32> to vector<32x128xbf16>
    %c0_35 = arith.constant 0 : index
    %c0_36 = arith.constant 0 : index
    %42 = vector.load %arg12[%c0_35, %c0_36] : memref<128x128xbf16, #tpu.memory_space<vmem>>, vector<128x128xbf16>
    %cst_37 = arith.constant dense<0.000000e+00> : vector<32x128xf32>
    %43 = tpu.matmul %41, %42, %cst_37 {dimension_numbers = #tpu.dot_dimension_numbers<[1], [0], [0], [1], [0, 0, 1, 1], [], []>} : vector<32x128xbf16>, vector<128x128xbf16>, vector<32x128xf32> -> vector<32x128xf32>
    %c0_38 = arith.constant 0 : index
    %c0_39 = arith.constant 0 : index
    %44 = vector.load %arg13[%c0_38, %c0_39] : memref<1x128xf32, #tpu.memory_space<vmem>>, vector<1x128xf32>
    %45 = vector.broadcast %44 : vector<1x128xf32> to vector<32x128xf32>
    %46 = arith.addf %43, %45 : vector<32x128xf32>
    %c0_40 = arith.constant 0 : index
    %c0_41 = arith.constant 0 : index
    %47 = vector.load %arg14[%c0_40, %c0_41] : memref<32x128xf32, #tpu.memory_space<vmem>>, vector<32x128xf32>
    tpu.vector_store %arg14[%c0_40, %c0_41], %46 {strides = array<i32>} : memref<32x128xf32, #tpu.memory_space<vmem>>, vector<32x128xf32>,
    return
  }
  func.func @transform_0(%arg0: i32) -> (i32, i32) {
    %c0_i32 = arith.constant 0 : i32
    %c0_i32_0 = arith.constant 0 : i32
    return %arg0, %c0_i32 : i32, i32
  }
  func.func @transform_1(%arg0: i32) -> (i32, i32) {
    %c0_i32 = arith.constant 0 : i32
    %c0_i32_0 = arith.constant 0 : i32
    %c0_i32_1 = arith.constant 0 : i32
    return %c0_i32, %c0_i32_0 : i32, i32
  }
  func.func @transform_2(%arg0: i32) -> (i32, i32) {
    %c0_i32 = arith.constant 0 : i32
    %c0_i32_0 = arith.constant 0 : i32
    %c0_i32_1 = arith.constant 0 : i32
    return %c0_i32, %c0_i32_0 : i32, i32
  }
  func.func @transform_3(%arg0: i32) -> (i32, i32) {
    %c0_i32 = arith.constant 0 : i32
    %c0_i32_0 = arith.constant 0 : i32
    %c0_i32_1 = arith.constant 0 : i32
    return %c0_i32, %c0_i32_0 : i32, i32
  }
  func.func @transform_4(%arg0: i32) -> (i32, i32) {
    %c0_i32 = arith.constant 0 : i32
    %c0_i32_0 = arith.constant 0 : i32
    %c0_i32_1 = arith.constant 0 : i32
    return %c0_i32, %c0_i32_0 : i32, i32
  }
  func.func @transform_5(%arg0: i32) -> (i32, i32) {
    %c0_i32 = arith.constant 0 : i32
    %c0_i32_0 = arith.constant 0 : i32
    %c0_i32_1 = arith.constant 0 : i32
    return %c0_i32, %c0_i32_0 : i32, i32
  }
  func.func @transform_6(%arg0: i32) -> (i32, i32) {
    %c0_i32 = arith.constant 0 : i32
    %c0_i32_0 = arith.constant 0 : i32
    %c0_i32_1 = arith.constant 0 : i32
    return %c0_i32, %c0_i32_0 : i32, i32
  }
  func.func @transform_7(%arg0: i32) -> (i32, i32) {
    %c0_i32 = arith.constant 0 : i32
    %c0_i32_0 = arith.constant 0 : i32
    %c0_i32_1 = arith.constant 0 : i32
    return %c0_i32, %c0_i32_0 : i32, i32
  }
  func.func @transform_8(%arg0: i32) -> (i32, i32) {
    %c0_i32 = arith.constant 0 : i32
    %c0_i32_0 = arith.constant 0 : i32
    %c0_i32_1 = arith.constant 0 : i32
    return %c0_i32, %c0_i32_0 : i32, i32
  }
  func.func @transform_9(%arg0: i32) -> (i32, i32) {
    %c0_i32 = arith.constant 0 : i32
    %c0_i32_0 = arith.constant 0 : i32
    %c0_i32_1 = arith.constant 0 : i32
    return %c0_i32, %c0_i32_0 : i32, i32
  }
  func.func @transform_10(%arg0: i32) -> (i32, i32) {
    %c0_i32 = arith.constant 0 : i32
    %c0_i32_0 = arith.constant 0 : i32
    %c0_i32_1 = arith.constant 0 : i32
    return %c0_i32, %c0_i32_0 : i32, i32
  }
  func.func @transform_11(%arg0: i32) -> (i32, i32) {
    %c0_i32 = arith.constant 0 : i32
    %c0_i32_0 = arith.constant 0 : i32
    %c0_i32_1 = arith.constant 0 : i32
    return %c0_i32, %c0_i32_0 : i32, i32
  }
  func.func @transform_12(%arg0: i32) -> (i32, i32) {
    %c0_i32 = arith.constant 0 : i32
    %c0_i32_0 = arith.constant 0 : i32
    %c0_i32_1 = arith.constant 0 : i32
    return %c0_i32, %c0_i32_0 : i32, i32
  }
  func.func @transform_13(%arg0: i32) -> (i32, i32) {
    %c0_i32 = arith.constant 0 : i32
    %c0_i32_0 = arith.constant 0 : i32
    return %arg0, %c0_i32 : i32, i32
  }
  func.func @transform_14(%arg0: i32) -> (i32, i32) {
    %c0_i32 = arith.constant 0 : i32
    %c0_i32_0 = arith.constant 0 : i32
    return %arg0, %c0_i32 : i32, i32
  }
  func.func @transform_15(%arg0: i32) -> (i32, i32) {
    %c0_i32 = arith.constant 0 : i32
    %c0_i32_0 = arith.constant 0 : i32
    return %arg0, %c0_i32 : i32, i32
  }
  func.func @transform_16(%arg0: i32) -> (i32, i32) {
    %c0_i32 = arith.constant 0 : i32
    %c0_i32_0 = arith.constant 0 : i32
    return %arg0, %c0_i32 : i32, i32
  }
}

</mosaic_0001>

<llo_original>
// kernel: ae_forward.1
$region0: #{ae_forward.1}
  #allocation0 [shape = 'u32[]', space=smem, size = 0x4, offset = 0x4, fixed_abs, tag = 'smem constant byte address 0x4 - core index']
  #allocation1 [shape = 'u32[72,128]{1,0:T(1,128)}', space=vmem, size = 0x9000, scoped, tag = 'internal scratch']
  %s0 = inlined_call_operand.vmem [shape: bf16[64,128], index: 0, kind: input, shape index: {}]
  %s1 = inlined_call_operand.vmem [shape: bf16[128,128], index: 1, kind: input, shape index: {}]
  %s2 = inlined_call_operand.vmem [shape: f32[1,128], index: 2, kind: input, shape index: {}]
  %s3 = inlined_call_operand.vmem [shape: bf16[128,128], index: 3, kind: input, shape index: {}]
  %s4 = inlined_call_operand.vmem [shape: f32[1,128], index: 4, kind: input, shape index: {}]
  %s5 = inlined_call_operand.hbm [shape: bf16[128,128], index: 5, kind: input, shape index: {}]
  %s6 = inlined_call_operand.vmem [shape: f32[1,128], index: 6, kind: input, shape index: {}]
  %s7 = inlined_call_operand.hbm [shape: bf16[128,128], index: 7, kind: input, shape index: {}]
  %s8 = inlined_call_operand.vmem [shape: f32[1,128], index: 8, kind: input, shape index: {}]
  %s9 = inlined_call_operand.hbm [shape: bf16[128,128], index: 9, kind: input, shape index: {}]
  %s10 = inlined_call_operand.vmem [shape: f32[1,128], index: 10, kind: input, shape index: {}]
  %s11 = inlined_call_operand.hbm [shape: bf16[128,128], index: 11, kind: input, shape index: {}]
  %s12 = inlined_call_operand.vmem [shape: f32[1,128], index: 12, kind: input, shape index: {}]
  %s13 = inlined_call_operand.vmem [shape: f32[64,128], index: 13, kind: output, shape index: {0}]
  %s14 = inlined_call_operand.vmem [shape: f32[64,128], index: 14, kind: output, shape index: {1}]
  %s15 = inlined_call_operand.vmem [shape: f32[64,128], index: 15, kind: output, shape index: {2}]
  %s16 = inlined_call_operand.vmem [shape: f32[64,128], index: 16, kind: output, shape index: {3}]
  %17 = xla_tuple %s13, %s14, %s15, %s16
  %s18 = sld [smem:[#allocation0]]
  $region125: #{ae_forward.1} parent=0
    _
  %s20 = ssub.s32 1, %s18
  %s21 = scalar_select 0, %s20, %s18
  $region1: #{ae_forward.1} parent=0
    #allocation2 [shape = 'u8[32768]{0}', space=vmem, size = 0x8000, scoped, tag = 'input window, operand 5, single buffered']
    #allocation3 [shape = 's32[2]{0}', space=sflag, size = 0x8, scoped, tag = 'scoped memory for ae_forward.1']
    #allocation4 [shape = 'u8[32768]{0}', space=vmem, size = 0x8000, scoped, tag = 'input window, operand 7, single buffered']
    #allocation5 [shape = 's32[1]{0}', space=sflag, size = 0x4, scoped, tag = 'scoped memory for ae_forward.1']
    #allocation6 [shape = 'u8[32768]{0}', space=vmem, size = 0x8000, scoped, tag = 'input window, operand 9, single buffered']
    #allocation7 [shape = 'u8[32768]{0}', space=vmem, size = 0x8000, scoped, tag = 'input window, operand 11, single buffered']
    #allocation8 [shape = 's32[1]{0}', space=sflag, size = 0x4, scoped, tag = 'scoped memory for ae_forward.1']
    %22 = vsyncpa [#allocation3], 0
    %23 = vsyncpa [#allocation5], 0
    %24 = vsyncpa [#allocation8], 0
    loop: start=0, step=1, limit=4
    $region2: #{ae_forward.1} parent=1 // loop_pre_header
      _
    $region3: #{ae_forward.1} parent=1 // loop_header
      %s26 = sphi 0, %s30
      %p27 = scmp.ge.s32.totalorder %s26, 4
      %s36 = sphi 0, %s38
      %s39 = sphi 0, %s36
      %s40 = sphi 0, %s39
      %s56 = sphi 0, %s40
      %s60 = sphi 0, %s60
      %s62 = sphi 0, %s60
      %s63 = sphi 0, %s62
      %s77 = sphi 0, %s63
      %s81 = sphi 0, %s81
      %s83 = sphi 0, %s81
      %s84 = sphi 0, %s83
      %s98 = sphi 0, %s84
      %s102 = sphi 0, %s102
      %s104 = sphi 0, %s102
      %s105 = sphi 0, %s104
      %s119 = sphi 0, %s105
      %s123 = sphi 0, %s123
      %s125 = sphi 0, %s123
      %s126 = sphi 0, %s125
      %s140 = sphi 0, %s126
      %s144 = sphi 0, %s144
      %s146 = sphi 0, %s144
      %s147 = sphi 0, %s146
      %s161 = sphi 0, %s147
      %s165 = sphi 0, %s165
      %s167 = sphi 0, %s165
      %s168 = sphi 0, %s167
      %s182 = sphi 0, %s168
      %s186 = sphi 0, %s186
      %s188 = sphi 0, %s186
      %s189 = sphi 0, %s188
      %s203 = sphi 0, %s189
      %s207 = sphi 0, %s207
      %s209 = sphi 0, %s207
      %s210 = sphi 0, %s209
      %s224 = sphi 0, %s210
      %s228 = sphi 0, %s228
      %s230 = sphi 0, %s228
      %s231 = sphi 0, %s230
      %s245 = sphi 0, %s231
      %s249 = sphi 0, %s249
      %s251 = sphi 0, %s249
      %s252 = sphi 0, %s251
      %s266 = sphi 0, %s252
      %s270 = sphi 0, %s270
      %s272 = sphi 0, %s270
      %s273 = sphi 0, %s272
      %s287 = sphi 0, %s273
      %s291 = sphi 0, %s291
      %s293 = sphi 0, %s291
      %s294 = sphi 0, %s293
      %s308 = sphi 0, %s294
      %s314 = sphi 0, %s316
      %s317 = sphi 0, %s314
      %s318 = sphi 0, %s317
      %s334 = sphi 0, %s318
      %s340 = sphi 0, %s342
      %s343 = sphi 0, %s340
      %s344 = sphi 0, %s343
      %s360 = sphi 0, %s344
      %s366 = sphi 0, %s368
      %s369 = sphi 0, %s366
      %s370 = sphi 0, %s369
      %s386 = sphi 0, %s370
      %s392 = sphi 0, %s394
      %s395 = sphi 0, %s392
      %s396 = sphi 0, %s395
      %s412 = sphi 0, %s396
    $region4: #{ae_forward.1} parent=1 // loop_header_branch
      %29 = sbr.rel (%p27) target = $region8
    $region5: #{ae_forward.1} parent=1 // loop_body
      %s31 = ssub.s32 %s26, 1
      %s32 = ssub.s32 %s26, 2
      %s33 = sadd.s32 %s26, 1
      %s34 = ssub.s32 %s26, %s33
      %p35 = scmp.eq.s32.totalorder %s34, 0
      %s37 = sadd.s32 %s36, 1
      %s38 = scalar_select %p35, %s36, %s37
      %p41 = pneg %p35
      %p42 = scmp.eq.s32.totalorder %s26, 1
      %p43 = por %p41, %p42
      %p44 = scmp.ne.s32.totalorder %s36, %s39
      %p45 = scmp.eq.s32.totalorder %s26, 0
      %p46 = por %p44, %p45
      %p47 = scmp.ne.s32.totalorder %s36, %s39
      %p48 = scmp.eq.s32.totalorder %s31, 1
      %p49 = por %p47, %p48
      %p50 = scmp.ne.s32.totalorder %s39, %s40
      %p51 = scmp.eq.s32.totalorder %s31, 0
      %p52 = por %p50, %p51
      %p53 = scmp.ne.s32.totalorder %s39, %s40
      %p54 = scmp.eq.s32.totalorder %s32, 1
      %p55 = por %p53, %p54
      %p57 = scmp.ne.s32.totalorder %s40, %s56
      %p58 = scmp.eq.s32.totalorder %s32, 0
      %p59 = por %p57, %p58
      %s61 = sadd.s32 %s60, 1
      %p64 = scmp.eq.s32.totalorder %s26, 1
      %p65 = scmp.ne.s32.totalorder %s60, %s62
      %p66 = scmp.eq.s32.totalorder %s26, 0
      %p67 = por %p65, %p66
      %p68 = scmp.ne.s32.totalorder %s60, %s62
      %p69 = scmp.eq.s32.totalorder %s31, 1
      %p70 = por %p68, %p69
      %p71 = scmp.ne.s32.totalorder %s62, %s63
      %p72 = scmp.eq.s32.totalorder %s31, 0
      %p73 = por %p71, %p72
      %p74 = scmp.ne.s32.totalorder %s62, %s63
      %p75 = scmp.eq.s32.totalorder %s32, 1
      %p76 = por %p74, %p75
      %p78 = scmp.ne.s32.totalorder %s63, %s77
      %p79 = scmp.eq.s32.totalorder %s32, 0
      %p80 = por %p78, %p79
      %s82 = sadd.s32 %s81, 1
      %p85 = scmp.eq.s32.totalorder %s26, 1
      %p86 = scmp.ne.s32.totalorder %s81, %s83
      %p87 = scmp.eq.s32.totalorder %s26, 0
      %p88 = por %p86, %p87
      %p89 = scmp.ne.s32.totalorder %s81, %s83
      %p90 = scmp.eq.s32.totalorder %s31, 1
      %p91 = por %p89, %p90
      %p92 = scmp.ne.s32.totalorder %s83, %s84
      %p93 = scmp.eq.s32.totalorder %s31, 0
      %p94 = por %p92, %p93
      %p95 = scmp.ne.s32.totalorder %s83, %s84
      %p96 = scmp.eq.s32.totalorder %s32, 1
      %p97 = por %p95, %p96
      %p99 = scmp.ne.s32.totalorder %s84, %s98
      %p100 = scmp.eq.s32.totalorder %s32, 0
      %p101 = por %p99, %p100
      %s103 = sadd.s32 %s102, 1
      %p106 = scmp.eq.s32.totalorder %s26, 1
      %p107 = scmp.ne.s32.totalorder %s102, %s104
      %p108 = scmp.eq.s32.totalorder %s26, 0
      %p109 = por %p107, %p108
      %p110 = scmp.ne.s32.totalorder %s102, %s104
      %p111 = scmp.eq.s32.totalorder %s31, 1
      %p112 = por %p110, %p111
      %p113 = scmp.ne.s32.totalorder %s104, %s105
      %p114 = scmp.eq.s32.totalorder %s31, 0
      %p115 = por %p113, %p114
      %p116 = scmp.ne.s32.totalorder %s104, %s105
      %p117 = scmp.eq.s32.totalorder %s32, 1
      %p118 = por %p116, %p117
      %p120 = scmp.ne.s32.totalorder %s105, %s119
      %p121 = scmp.eq.s32.totalorder %s32, 0
      %p122 = por %p120, %p121
      %s124 = sadd.s32 %s123, 1
      %p127 = scmp.eq.s32.totalorder %s26, 1
      %p128 = scmp.ne.s32.totalorder %s123, %s125
      %p129 = scmp.eq.s32.totalorder %s26, 0
      %p130 = por %p128, %p129
      %p131 = scmp.ne.s32.totalorder %s123, %s125
      %p132 = scmp.eq.s32.totalorder %s31, 1
      %p133 = por %p131, %p132
      %p134 = scmp.ne.s32.totalorder %s125, %s126
      %p135 = scmp.eq.s32.totalorder %s31, 0
      %p136 = por %p134, %p135
      %p137 = scmp.ne.s32.totalorder %s125, %s126
      %p138 = scmp.eq.s32.totalorder %s32, 1
      %p139 = por %p137, %p138
      %p141 = scmp.ne.s32.totalorder %s126, %s140
      %p142 = scmp.eq.s32.totalorder %s32, 0
      %p143 = por %p141, %p142
      %s145 = sadd.s32 %s144, 1
      %p148 = scmp.eq.s32.totalorder %s26, 1
      %p149 = scmp.ne.s32.totalorder %s144, %s146
      %p150 = scmp.eq.s32.totalorder %s26, 0
      %p151 = por %p149, %p150
      %p152 = scmp.ne.s32.totalorder %s144, %s146
      %p153 = scmp.eq.s32.totalorder %s31, 1
      %p154 = por %p152, %p153
      %p155 = scmp.ne.s32.totalorder %s146, %s147
      %p156 = scmp.eq.s32.totalorder %s31, 0
      %p157 = por %p155, %p156
      %p158 = scmp.ne.s32.totalorder %s146, %s147
      %p159 = scmp.eq.s32.totalorder %s32, 1
      %p160 = por %p158, %p159
      %p162 = scmp.ne.s32.totalorder %s147, %s161
      %p163 = scmp.eq.s32.totalorder %s32, 0
      %p164 = por %p162, %p163
      %s166 = sadd.s32 %s165, 1
      %p169 = scmp.eq.s32.totalorder %s26, 1
      %p170 = scmp.ne.s32.totalorder %s165, %s167
      %p171 = scmp.eq.s32.totalorder %s26, 0
      %p172 = por %p170, %p171
      %p173 = scmp.ne.s32.totalorder %s165, %s167
      %p174 = scmp.eq.s32.totalorder %s31, 1
      %p175 = por %p173, %p174
      %p176 = scmp.ne.s32.totalorder %s167, %s168
      %p177 = scmp.eq.s32.totalorder %s31, 0
      %p178 = por %p176, %p177
      %p179 = scmp.ne.s32.totalorder %s167, %s168
      %p180 = scmp.eq.s32.totalorder %s32, 1
      %p181 = por %p179, %p180
      %p183 = scmp.ne.s32.totalorder %s168, %s182
      %p184 = scmp.eq.s32.totalorder %s32, 0
      %p185 = por %p183, %p184
      %s187 = sadd.s32 %s186, 1
      %p190 = scmp.eq.s32.totalorder %s26, 1
      %p191 = scmp.ne.s32.totalorder %s186, %s188
      %p192 = scmp.eq.s32.totalorder %s26, 0
      %p193 = por %p191, %p192
      %p194 = scmp.ne.s32.totalorder %s186, %s188
      %p195 = scmp.eq.s32.totalorder %s31, 1
      %p196 = por %p194, %p195
      %p197 = scmp.ne.s32.totalorder %s188, %s189
      %p198 = scmp.eq.s32.totalorder %s31, 0
      %p199 = por %p197, %p198
      %p200 = scmp.ne.s32.totalorder %s188, %s189
      %p201 = scmp.eq.s32.totalorder %s32, 1
      %p202 = por %p200, %p201
      %p204 = scmp.ne.s32.totalorder %s189, %s203
      %p205 = scmp.eq.s32.totalorder %s32, 0
      %p206 = por %p204, %p205
      %s208 = sadd.s32 %s207, 1
      %p211 = scmp.eq.s32.totalorder %s26, 1
      %p212 = scmp.ne.s32.totalorder %s207, %s209
      %p213 = scmp.eq.s32.totalorder %s26, 0
      %p214 = por %p212, %p213
      %p215 = scmp.ne.s32.totalorder %s207, %s209
      %p216 = scmp.eq.s32.totalorder %s31, 1
      %p217 = por %p215, %p216
      %p218 = scmp.ne.s32.totalorder %s209, %s210
      %p219 = scmp.eq.s32.totalorder %s31, 0
      %p220 = por %p218, %p219
      %p221 = scmp.ne.s32.totalorder %s209, %s210
      %p222 = scmp.eq.s32.totalorder %s32, 1
      %p223 = por %p221, %p222
      %p225 = scmp.ne.s32.totalorder %s210, %s224
      %p226 = scmp.eq.s32.totalorder %s32, 0
      %p227 = por %p225, %p226
      %s229 = sadd.s32 %s228, 1
      %p232 = scmp.eq.s32.totalorder %s26, 1
      %p233 = scmp.ne.s32.totalorder %s228, %s230
      %p234 = scmp.eq.s32.totalorder %s26, 0
      %p235 = por %p233, %p234
      %p236 = scmp.ne.s32.totalorder %s228, %s230
      %p237 = scmp.eq.s32.totalorder %s31, 1
      %p238 = por %p236, %p237
      %p239 = scmp.ne.s32.totalorder %s230, %s231
      %p240 = scmp.eq.s32.totalorder %s31, 0
      %p241 = por %p239, %p240
      %p242 = scmp.ne.s32.totalorder %s230, %s231
      %p243 = scmp.eq.s32.totalorder %s32, 1
      %p244 = por %p242, %p243
      %p246 = scmp.ne.s32.totalorder %s231, %s245
      %p247 = scmp.eq.s32.totalorder %s32, 0
      %p248 = por %p246, %p247
      %s250 = sadd.s32 %s249, 1
      %p253 = scmp.eq.s32.totalorder %s26, 1
      %p254 = scmp.ne.s32.totalorder %s249, %s251
      %p255 = scmp.eq.s32.totalorder %s26, 0
      %p256 = por %p254, %p255
      %p257 = scmp.ne.s32.totalorder %s249, %s251
      %p258 = scmp.eq.s32.totalorder %s31, 1
      %p259 = por %p257, %p258
      %p260 = scmp.ne.s32.totalorder %s251, %s252
      %p261 = scmp.eq.s32.totalorder %s31, 0
      %p262 = por %p260, %p261
      %p263 = scmp.ne.s32.totalorder %s251, %s252
      %p264 = scmp.eq.s32.totalorder %s32, 1
      %p265 = por %p263, %p264
      %p267 = scmp.ne.s32.totalorder %s252, %s266
      %p268 = scmp.eq.s32.totalorder %s32, 0
      %p269 = por %p267, %p268
      %s271 = sadd.s32 %s270, 1
      %p274 = scmp.eq.s32.totalorder %s26, 1
      %p275 = scmp.ne.s32.totalorder %s270, %s272
      %p276 = scmp.eq.s32.totalorder %s26, 0
      %p277 = por %p275, %p276
      %p278 = scmp.ne.s32.totalorder %s270, %s272
      %p279 = scmp.eq.s32.totalorder %s31, 1
      %p280 = por %p278, %p279
      %p281 = scmp.ne.s32.totalorder %s272, %s273
      %p282 = scmp.eq.s32.totalorder %s31, 0
      %p283 = por %p281, %p282
      %p284 = scmp.ne.s32.totalorder %s272, %s273
      %p285 = scmp.eq.s32.totalorder %s32, 1
      %p286 = por %p284, %p285
      %p288 = scmp.ne.s32.totalorder %s273, %s287
      %p289 = scmp.eq.s32.totalorder %s32, 0
      %p290 = por %p288, %p289
      %s292 = sadd.s32 %s291, 1
      %p295 = scmp.eq.s32.totalorder %s26, 1
      %p296 = scmp.ne.s32.totalorder %s291, %s293
      %p297 = scmp.eq.s32.totalorder %s26, 0
      %p298 = por %p296, %p297
      %p299 = scmp.ne.s32.totalorder %s291, %s293
      %p300 = scmp.eq.s32.totalorder %s31, 1
      %p301 = por %p299, %p300
      %p302 = scmp.ne.s32.totalorder %s293, %s294
      %p303 = scmp.eq.s32.totalorder %s31, 0
      %p304 = por %p302, %p303
      %p305 = scmp.ne.s32.totalorder %s293, %s294
      %p306 = scmp.eq.s32.totalorder %s32, 1
      %p307 = por %p305, %p306
      %p309 = scmp.ne.s32.totalorder %s294, %s308
      %p310 = scmp.eq.s32.totalorder %s32, 0
      %p311 = por %p309, %p310
      %s312 = ssub.s32 %s26, %s33
      %p313 = scmp.eq.s32.totalorder %s312, 0
      %s315 = sadd.s32 %s314, 1
      %s316 = scalar_select %p313, %s314, %s315
      %p319 = pneg %p313
      %p320 = scmp.eq.s32.totalorder %s26, 1
      %p321 = por %p319, %p320
      %p322 = scmp.ne.s32.totalorder %s314, %s317
      %p323 = scmp.eq.s32.totalorder %s26, 0
      %p324 = por %p322, %p323
      %p325 = scmp.ne.s32.totalorder %s314, %s317
      %p326 = scmp.eq.s32.totalorder %s31, 1
      %p327 = por %p325, %p326
      %p328 = scmp.ne.s32.totalorder %s317, %s318
      %p329 = scmp.eq.s32.totalorder %s31, 0
      %p330 = por %p328, %p329
      %p331 = scmp.ne.s32.totalorder %s317, %s318
      %p332 = scmp.eq.s32.totalorder %s32, 1
      %p333 = por %p331, %p332
      %p335 = scmp.ne.s32.totalorder %s318, %s334
      %p336 = scmp.eq.s32.totalorder %s32, 0
      %p337 = por %p335, %p336
      %s338 = ssub.s32 %s26, %s33
      %p339 = scmp.eq.s32.totalorder %s338, 0
      %s341 = sadd.s32 %s340, 1
      %s342 = scalar_select %p339, %s340, %s341
      %p345 = pneg %p339
      %p346 = scmp.eq.s32.totalorder %s26, 1
      %p347 = por %p345, %p346
      %p348 = scmp.ne.s32.totalorder %s340, %s343
      %p349 = scmp.eq.s32.totalorder %s26, 0
      %p350 = por %p348, %p349
      %p351 = scmp.ne.s32.totalorder %s340, %s343
      %p352 = scmp.eq.s32.totalorder %s31, 1
      %p353 = por %p351, %p352
      %p354 = scmp.ne.s32.totalorder %s343, %s344
      %p355 = scmp.eq.s32.totalorder %s31, 0
      %p356 = por %p354, %p355
      %p357 = scmp.ne.s32.totalorder %s343, %s344
      %p358 = scmp.eq.s32.totalorder %s32, 1
      %p359 = por %p357, %p358
      %p361 = scmp.ne.s32.totalorder %s344, %s360
      %p362 = scmp.eq.s32.totalorder %s32, 0
      %p363 = por %p361, %p362
      %s364 = ssub.s32 %s26, %s33
      %p365 = scmp.eq.s32.totalorder %s364, 0
      %s367 = sadd.s32 %s366, 1
      %s368 = scalar_select %p365, %s366, %s367
      %p371 = pneg %p365
      %p372 = scmp.eq.s32.totalorder %s26, 1
      %p373 = por %p371, %p372
      %p374 = scmp.ne.s32.totalorder %s366, %s369
      %p375 = scmp.eq.s32.totalorder %s26, 0
      %p376 = por %p374, %p375
      %p377 = scmp.ne.s32.totalorder %s366, %s369
      %p378 = scmp.eq.s32.totalorder %s31, 1
      %p379 = por %p377, %p378
      %p380 = scmp.ne.s32.totalorder %s369, %s370
      %p381 = scmp.eq.s32.totalorder %s31, 0
      %p382 = por %p380, %p381
      %p383 = scmp.ne.s32.totalorder %s369, %s370
      %p384 = scmp.eq.s32.totalorder %s32, 1
      %p385 = por %p383, %p384
      %p387 = scmp.ne.s32.totalorder %s370, %s386
      %p388 = scmp.eq.s32.totalorder %s32, 0
      %p389 = por %p387, %p388
      %s390 = ssub.s32 %s26, %s33
      %p391 = scmp.eq.s32.totalorder %s390, 0
      %s393 = sadd.s32 %s392, 1
      %s394 = scalar_select %p391, %s392, %s393
      %p397 = pneg %p391
      %p398 = scmp.eq.s32.totalorder %s26, 1
      %p399 = por %p397, %p398
      %p400 = scmp.ne.s32.totalorder %s392, %s395
      %p401 = scmp.eq.s32.totalorder %s26, 0
      %p402 = por %p400, %p401
      %p403 = scmp.ne.s32.totalorder %s392, %s395
      %p404 = scmp.eq.s32.totalorder %s31, 1
      %p405 = por %p403, %p404
      %p406 = scmp.ne.s32.totalorder %s395, %s396
      %p407 = scmp.eq.s32.totalorder %s31, 0
      %p408 = por %p406, %p407
      %p409 = scmp.ne.s32.totalorder %s395, %s396
      %p410 = scmp.eq.s32.totalorder %s32, 1
      %p411 = por %p409, %p410
      %p413 = scmp.ne.s32.totalorder %s396, %s412
      %p414 = scmp.eq.s32.totalorder %s32, 0
      %p415 = por %p413, %p414
      %p416 = scmp.le.s32.totalorder 1, %s26
      %p417 = scmp.lt.s32.totalorder %s26, 3
      %p418 = pnand %p416, %p417
      %p419 = pneg %p418
      // Predicated region
      $region9: #{ae_forward.1} parent=5 // pred_check
        _
      $region10: #{ae_forward.1} parent=5 // pred_check_branch
        %421 = sbr.rel (%p418) target = $region12
      $region11: #{ae_forward.1} parent=5 // pred_region
        %s422 = ssub.s32 %s26, 1
        // Predicated region
        $region13: #{ae_forward.1} parent=11 // pred_check
          %p423 = pneg %p73
        $region14: #{ae_forward.1} parent=11 // pred_check_branch
          %425 = sbr.rel (%p423) target = $region16
        $region15: #{ae_forward.1} parent=11 // pred_region
          _
        $region16: #{ae_forward.1} parent=11 // pred_fallthru
          _
        // Predicated region
        $region17: #{ae_forward.1} parent=11 // pred_check
          %p426 = pneg %p94
        $region18: #{ae_forward.1} parent=11 // pred_check_branch
          %428 = sbr.rel (%p426) target = $region20
        $region19: #{ae_forward.1} parent=11 // pred_region
          _
        $region20: #{ae_forward.1} parent=11 // pred_fallthru
          _
        // Predicated region
        $region21: #{ae_forward.1} parent=11 // pred_check
          %p429 = pneg %p115
        $region22: #{ae_forward.1} parent=11 // pred_check_branch
          %431 = sbr.rel (%p429) target = $region24
        $region23: #{ae_forward.1} parent=11 // pred_region
          _
        $region24: #{ae_forward.1} parent=11 // pred_fallthru
          _
        // Predicated region
        $region25: #{ae_forward.1} parent=11 // pred_check
          %p432 = pneg %p136
        $region26: #{ae_forward.1} parent=11 // pred_check_branch
          %434 = sbr.rel (%p432) target = $region28
        $region27: #{ae_forward.1} parent=11 // pred_region
          _
        $region28: #{ae_forward.1} parent=11 // pred_fallthru
          _
        // Predicated region
        $region29: #{ae_forward.1} parent=11 // pred_check
          %p435 = pneg %p157
        $region30: #{ae_forward.1} parent=11 // pred_check_branch
          %437 = sbr.rel (%p435) target = $region32
        $region31: #{ae_forward.1} parent=11 // pred_region
          %439 = vsyncadd [#allocation3], 0
          %s440 = sshll.u32 %s5, 4
          %s441 = int_to_ptr.hbm [resolvable:$true] %s440
          %s442 = sshll.u32 [#allocation2], 4
          %s443 = int_to_ptr.vmem [resolvable:$true] %s442
          %448 = dma.hbm_to_vmem [thread:$0]  %s441, 1024, %s443, [#allocation3], 64, 64, 4
        $region32: #{ae_forward.1} parent=11 // pred_fallthru
          _
        // Predicated region
        $region33: #{ae_forward.1} parent=11 // pred_check
          %p449 = pneg %p178
        $region34: #{ae_forward.1} parent=11 // pred_check_branch
          %451 = sbr.rel (%p449) target = $region36
        $region35: #{ae_forward.1} parent=11 // pred_region
          _
        $region36: #{ae_forward.1} parent=11 // pred_fallthru
          _
        // Predicated region
        $region37: #{ae_forward.1} parent=11 // pred_check
          %p452 = pneg %p199
        $region38: #{ae_forward.1} parent=11 // pred_check_branch
          %454 = sbr.rel (%p452) target = $region40
        $region39: #{ae_forward.1} parent=11 // pred_region
          %456 = vsyncadd [#allocation5], 0
          %s457 = sshll.u32 %s7, 4
          %s458 = int_to_ptr.hbm [resolvable:$true] %s457
          %s459 = sshll.u32 [#allocation4], 4
          %s460 = int_to_ptr.vmem [resolvable:$true] %s459
          %465 = dma.hbm_to_vmem [thread:$0]  %s458, 1024, %s460, [#allocation5], 64, 64, 4
        $region40: #{ae_forward.1} parent=11 // pred_fallthru
          _
        // Predicated region
        $region41: #{ae_forward.1} parent=11 // pred_check
          %p466 = pneg %p220
        $region42: #{ae_forward.1} parent=11 // pred_check_branch
          %468 = sbr.rel (%p466) target = $region44
        $region43: #{ae_forward.1} parent=11 // pred_region
          _
        $region44: #{ae_forward.1} parent=11 // pred_fallthru
          _
        // Predicated region
        $region45: #{ae_forward.1} parent=11 // pred_check
          %p469 = pneg %p241
        $region46: #{ae_forward.1} parent=11 // pred_check_branch
          %471 = sbr.rel (%p469) target = $region48
        $region47: #{ae_forward.1} parent=11 // pred_region
          %473 = vsyncadd [#allocation5], 0
          %s474 = sshll.u32 %s9, 4
          %s475 = int_to_ptr.hbm [resolvable:$true] %s474
          %s476 = sshll.u32 [#allocation6], 4
          %s477 = int_to_ptr.vmem [resolvable:$true] %s476
          %482 = dma.hbm_to_vmem [thread:$0]  %s475, 1024, %s477, [#allocation5], 64, 64, 4
        $region48: #{ae_forward.1} parent=11 // pred_fallthru
          _
        // Predicated region
        $region49: #{ae_forward.1} parent=11 // pred_check
          %p483 = pneg %p262
        $region50: #{ae_forward.1} parent=11 // pred_check_branch
          %485 = sbr.rel (%p483) target = $region52
        $region51: #{ae_forward.1} parent=11 // pred_region
          _
        $region52: #{ae_forward.1} parent=11 // pred_fallthru
          _
        // Predicated region
        $region53: #{ae_forward.1} parent=11 // pred_check
          %p486 = pneg %p283
        $region54: #{ae_forward.1} parent=11 // pred_check_branch
          %488 = sbr.rel (%p486) target = $region56
        $region55: #{ae_forward.1} parent=11 // pred_region
          %490 = vsyncadd [#allocation8], 0
          %s491 = sshll.u32 %s11, 4
          %s492 = int_to_ptr.hbm [resolvable:$true] %s491
          %s493 = sshll.u32 [#allocation7], 4
          %s494 = int_to_ptr.vmem [resolvable:$true] %s493
          %499 = dma.hbm_to_vmem [thread:$0]  %s492, 1024, %s494, [#allocation8], 64, 64, 4
        $region56: #{ae_forward.1} parent=11 // pred_fallthru
          _
        // Predicated region
        $region57: #{ae_forward.1} parent=11 // pred_check
          %p500 = pneg %p304
        $region58: #{ae_forward.1} parent=11 // pred_check_branch
          %502 = sbr.rel (%p500) target = $region60
        $region59: #{ae_forward.1} parent=11 // pred_region
          _
        $region60: #{ae_forward.1} parent=11 // pred_fallthru
          _
      $region12: #{ae_forward.1} parent=5 // pred_fallthru
        _
      %p503 = scmp.lt.s32.totalorder %s26, 2
      // Predicated region
      $region61: #{ae_forward.1} parent=5 // pred_check
        %p504 = pneg %p503
      $region62: #{ae_forward.1} parent=5 // pred_check_branch
        %506 = sbr.rel (%p504) target = $region64
      $region63: #{ae_forward.1} parent=5 // pred_region
        // Predicated region
        $region65: #{ae_forward.1} parent=63 // pred_check
          %p507 = pneg %p46
        $region66: #{ae_forward.1} parent=63 // pred_check_branch
          %509 = sbr.rel (%p507) target = $region68
        $region67: #{ae_forward.1} parent=63 // pred_region
          %s510 = smul.u32 4, %s26
          %p511 = scmp.lt.s32.totalorder %s510, 7
          %s512 = scalar_select %p511, %s510, 7
          %s513 = smul.addr %s512, 4
          %s514 = scalar_lea.vmem %s0, %s513
          %s515 = smul.u32 4, %s26
        $region68: #{ae_forward.1} parent=63 // pred_fallthru
          _
      $region64: #{ae_forward.1} parent=5 // pred_fallthru
        _
      %p516 = scmp.le.s32.totalorder 1, %s26
      %p517 = scmp.lt.s32.totalorder %s26, 3
      %p518 = pnand %p516, %p517
      %p519 = pneg %p518
      // Predicated region
      $region69: #{ae_forward.1} parent=5 // pred_check
        _
      $region70: #{ae_forward.1} parent=5 // pred_check_branch
        %521 = sbr.rel (%p518) target = $region72
      $region71: #{ae_forward.1} parent=5 // pred_region
        %s522 = ssub.s32 %s26, 1
        // Predicated region
        $region73: #{ae_forward.1} parent=71 // pred_check
          %p523 = pneg %p157
        $region74: #{ae_forward.1} parent=71 // pred_check_branch
          %525 = sbr.rel (%p523) target = $region76
        $region75: #{ae_forward.1} parent=71 // pred_region
          %527 = dma.done [#allocation3], 1024
        $region76: #{ae_forward.1} parent=71 // pred_fallthru
          _
        // Predicated region
        $region77: #{ae_forward.1} parent=71 // pred_check
          %p528 = pneg %p199
        $region78: #{ae_forward.1} parent=71 // pred_check_branch
          %530 = sbr.rel (%p528) target = $region80
        $region79: #{ae_forward.1} parent=71 // pred_region
          %532 = dma.done [#allocation5], 1024
        $region80: #{ae_forward.1} parent=71 // pred_fallthru
          _
        // Predicated region
        $region81: #{ae_forward.1} parent=71 // pred_check
          %p533 = pneg %p241
        $region82: #{ae_forward.1} parent=71 // pred_check_branch
          %535 = sbr.rel (%p533) target = $region84
        $region83: #{ae_forward.1} parent=71 // pred_region
          %537 = dma.done [#allocation5], 1024
        $region84: #{ae_forward.1} parent=71 // pred_fallthru
          _
        // Predicated region
        $region85: #{ae_forward.1} parent=71 // pred_check
          %p538 = pneg %p283
        $region86: #{ae_forward.1} parent=71 // pred_check_branch
          %540 = sbr.rel (%p538) target = $region88
        $region87: #{ae_forward.1} parent=71 // pred_region
          %542 = dma.done [#allocation8], 1024
        $region88: #{ae_forward.1} parent=71 // pred_fallthru
          _
        %s543 = smul.u32 4, %s31
        %p544 = scmp.lt.s32.totalorder %s543, 7
        %s545 = scalar_select %p544, %s543, 7
        %s546 = smul.addr %s545, 4
        %s547 = scalar_lea.vmem %s0, %s546
        %p548 = pneg %p52
        %p549 = pneg %p49
        %p550 = pneg %p73
        %p551 = pneg %p70
        %p552 = pneg %p94
        %p553 = pneg %p91
        %p554 = pneg %p115
        %p555 = pneg %p112
        %p556 = pneg %p136
        %p557 = pneg %p133
        %p558 = pneg %p157
        %p559 = pneg %p154
        %p560 = pneg %p178
        %p561 = pneg %p175
        %p562 = pneg %p199
        %p563 = pneg %p196
        %p564 = pneg %p220
        %p565 = pneg %p217
        %p566 = pneg %p241
        %p567 = pneg %p238
        %p568 = pneg %p262
        %p569 = pneg %p259
        %p570 = pneg %p283
        %p571 = pneg %p280
        %p572 = pneg %p304
        %p573 = pneg %p301
        %p574 = pneg %p330
        %p575 = pneg %p327
        %s576 = smul.u32 4, %s31
        %p577 = scmp.lt.s32.totalorder %s576, 7
        %s578 = scalar_select %p577, %s576, 7
        %s579 = smul.addr %s578, 8
        %s580 = scalar_lea.vmem %s13, %s579
        %p581 = pneg %p356
        %p582 = pneg %p353
        %s583 = smul.u32 4, %s31
        %p584 = scmp.lt.s32.totalorder %s583, 7
        %s585 = scalar_select %p584, %s583, 7
        %s586 = smul.addr %s585, 8
        %s587 = scalar_lea.vmem %s14, %s586
        %p588 = pneg %p382
        %p589 = pneg %p379
        %s590 = smul.u32 4, %s31
        %p591 = scmp.lt.s32.totalorder %s590, 7
        %s592 = scalar_select %p591, %s590, 7
        %s593 = smul.addr %s592, 8
        %s594 = scalar_lea.vmem %s15, %s593
        %p595 = pneg %p408
        %p596 = pneg %p405
        %s597 = smul.u32 4, %s31
        %p598 = scmp.lt.s32.totalorder %s597, 7
        %s599 = scalar_select %p598, %s597, 7
        %s600 = smul.addr %s599, 8
        %s601 = scalar_lea.vmem %s16, %s600
        %s602 = smul.u32 4, %s31
        %p603 = scmp.lt.s32.totalorder %s602, 7
        %s604 = scalar_select %p603, %s602, 7
        %s605 = smul.addr %s604, 4
        %s606 = scalar_lea.vmem %s0, %s605
        %s607 = smul.u32 4, %s31
        %s608 = smul.u32 4, %s31
        %p609 = scmp.lt.s32.totalorder %s608, 7
        %s610 = scalar_select %p609, %s608, 7
        %s611 = smul.addr %s610, 8
        %s612 = scalar_lea.vmem %s13, %s611
        %s613 = smul.u32 4, %s31
        %s614 = smul.u32 4, %s31
        %p615 = scmp.lt.s32.totalorder %s614, 7
        %s616 = scalar_select %p615, %s614, 7
        %s617 = smul.addr %s616, 8
        %s618 = scalar_lea.vmem %s14, %s617
        %s619 = smul.u32 4, %s31
        %s620 = smul.u32 4, %s31
        %p621 = scmp.lt.s32.totalorder %s620, 7
        %s622 = scalar_select %p621, %s620, 7
        %s623 = smul.addr %s622, 8
        %s624 = scalar_lea.vmem %s15, %s623
        %s625 = smul.u32 4, %s31
        %s626 = smul.u32 4, %s31
        %p627 = scmp.lt.s32.totalorder %s626, 7
        %s628 = scalar_select %p627, %s626, 7
        %s629 = smul.addr %s628, 8
        %s630 = scalar_lea.vmem %s16, %s629
        %s631 = smul.u32 4, %s31
        %v632 = vld [vmem:[%s606] sm:$0xf]
        %v633 = vld [vmem:[%s606 + $0x4] sm:$0xf]
        %v634 = vld [vmem:[%s606 + $0x8] sm:$0xf]
        %v635 = vld [vmem:[%s606 + $0xc] sm:$0xf]
        %v636 = vld [vmem:[%s1] sm:$0xf]
        %v637 = vld [vmem:[%s1 + $0x4] sm:$0xf]
        %v638 = vld [vmem:[%s1 + $0x8] sm:$0xf]
        %v639 = vld [vmem:[%s1 + $0xc] sm:$0xf]
        %v640 = vld [vmem:[%s1 + $0x10] sm:$0xf]
        %v641 = vld [vmem:[%s1 + $0x14] sm:$0xf]
        %v642 = vld [vmem:[%s1 + $0x18] sm:$0xf]
        %v643 = vld [vmem:[%s1 + $0x1c] sm:$0xf]
        %v644 = vld [vmem:[%s1 + $0x20] sm:$0xf]
        %v645 = vld [vmem:[%s1 + $0x24] sm:$0xf]
        %v646 = vld [vmem:[%s1 + $0x28] sm:$0xf]
        %v647 = vld [vmem:[%s1 + $0x2c] sm:$0xf]
        %v648 = vld [vmem:[%s1 + $0x30] sm:$0xf]
        %v649 = vld [vmem:[%s1 + $0x34] sm:$0xf]
        %v650 = vld [vmem:[%s1 + $0x38] sm:$0xf]
        %v651 = vld [vmem:[%s1 + $0x3c] sm:$0xf]
        %v652 = vld [vmem:[%s2] sm:$0x1]
        %v654 = vperm.slane %v652, 0
        %v660 = vunpack.c.l.b16 %v632
        %v661 = vunpack.c.l.b16 %v633
        %v662 = vunpack.c.l.b16 %v634
        %v663 = vunpack.c.l.b16 %v635
        %v664 = vpack.c.b16 %v661, %v660
        %v665 = vpack.c.b16 %v663, %v662
        %v684 = vunpack.c.l.b16 %v636
        %v685 = vunpack.c.l.b16 %v637
        %v686 = vunpack.c.l.b16 %v638
        %v687 = vunpack.c.l.b16 %v639
        %v688 = vunpack.c.l.b16 %v640
        %v689 = vunpack.c.l.b16 %v641
        %v690 = vunpack.c.l.b16 %v642
        %v691 = vunpack.c.l.b16 %v643
        %v692 = vunpack.c.l.b16 %v644
        %v693 = vunpack.c.l.b16 %v645
        %v694 = vunpack.c.l.b16 %v646
        %v695 = vunpack.c.l.b16 %v647
        %v696 = vunpack.c.l.b16 %v648
        %v697 = vunpack.c.l.b16 %v649
        %v698 = vunpack.c.l.b16 %v650
        %v699 = vunpack.c.l.b16 %v651
        %v700 = vpack.c.b16 %v685, %v684
        %v701 = vpack.c.b16 %v687, %v686
        %v702 = vpack.c.b16 %v689, %v688
        %v703 = vpack.c.b16 %v691, %v690
        %v704 = vpack.c.b16 %v693, %v692
        %v705 = vpack.c.b16 %v695, %v694
        %v706 = vpack.c.b16 %v697, %v696
        %v707 = vpack.c.b16 %v699, %v698
        %716 = vmatpush.bf16.msra.mxu0 %v707
        %717 = vmatpush.bf16.msra.mxu0 %v706
        %718 = vmatpush.bf16.msra.mxu0 %v705
        %719 = vmatpush.bf16.msra.mxu0 %v704
        %720 = vmatpush.bf16.msra.mxu0 %v703
        %721 = vmatpush.bf16.msra.mxu0 %v702
        %722 = vmatpush.bf16.msra.mxu0 %v701
        %723 = vmatpush.bf16.msra.mxu0 %v700
        %724 = vmatmul.bf16.gmra.mxu0 %v664
        %v725 = vpop.f32.mrf.mxu0
        %v726 = vadd.f32 %v654, %v725
        %v727 = vpop.f32.mrf.mxu0
        %v728 = vadd.f32 %v654, %v727
        %729 = vmatmul.bf16.gmra.mxu0 %v665
        %v730 = vpop.f32.mrf.mxu0
        %v731 = vadd.f32 %v654, %v730
        %v732 = vpop.f32.mrf.mxu0
        %v733 = vadd.f32 %v654, %v732
        %734 = vdwg.mxu0
        %v735 = vmax.f32 %v726, 0.0
        %v736 = vmax.f32 %v728, 0.0
        %v737 = vmax.f32 %v731, 0.0
        %v738 = vmax.f32 %v733, 0.0
        %739 = vst [vmem:[%s618] sm:$0xff] %v735
        %740 = vst [vmem:[%s618 + $0x8] sm:$0xff] %v736
        %741 = vst [vmem:[%s618 + $0x10] sm:$0xff] %v737
        %742 = vst [vmem:[%s618 + $0x18] sm:$0xff] %v738
        %v743 = vpack.c.bf16 %v736, %v735
        %v744 = vpack.c.bf16 %v738, %v737
        %v745 = vld [vmem:[%s3] sm:$0xf]
        %v746 = vld [vmem:[%s3 + $0x4] sm:$0xf]
        %v747 = vld [vmem:[%s3 + $0x8] sm:$0xf]
        %v748 = vld [vmem:[%s3 + $0xc] sm:$0xf]
        %v749 = vld [vmem:[%s3 + $0x10] sm:$0xf]
        %v750 = vld [vmem:[%s3 + $0x14] sm:$0xf]
        %v751 = vld [vmem:[%s3 + $0x18] sm:$0xf]
        %v752 = vld [vmem:[%s3 + $0x1c] sm:$0xf]
        %v753 = vld [vmem:[%s3 + $0x20] sm:$0xf]
        %v754 = vld [vmem:[%s3 + $0x24] sm:$0xf]
        %v755 = vld [vmem:[%s3 + $0x28] sm:$0xf]
        %v756 = vld [vmem:[%s3 + $0x2c] sm:$0xf]
        %v757 = vld [vmem:[%s3 + $0x30] sm:$0xf]
        %v758 = vld [vmem:[%s3 + $0x34] sm:$0xf]
        %v759 = vld [vmem:[%s3 + $0x38] sm:$0xf]
        %v760 = vld [vmem:[%s3 + $0x3c] sm:$0xf]
        %v761 = vld [vmem:[%s4] sm:$0x1]
        %v763 = vperm.slane %v761, 0
        %v781 = vunpack.c.l.b16 %v745
        %v782 = vunpack.c.l.b16 %v746
        %v783 = vunpack.c.l.b16 %v747
        %v784 = vunpack.c.l.b16 %v748
        %v785 = vunpack.c.l.b16 %v749
        %v786 = vunpack.c.l.b16 %v750
        %v787 = vunpack.c.l.b16 %v751
        %v788 = vunpack.c.l.b16 %v752
        %v789 = vunpack.c.l.b16 %v753
        %v790 = vunpack.c.l.b16 %v754
        %v791 = vunpack.c.l.b16 %v755
        %v792 = vunpack.c.l.b16 %v756
        %v793 = vunpack.c.l.b16 %v757
        %v794 = vunpack.c.l.b16 %v758
        %v795 = vunpack.c.l.b16 %v759
        %v796 = vunpack.c.l.b16 %v760
        %v797 = vpack.c.b16 %v782, %v781
        %v798 = vpack.c.b16 %v784, %v783
        %v799 = vpack.c.b16 %v786, %v785
        %v800 = vpack.c.b16 %v788, %v787
        %v801 = vpack.c.b16 %v790, %v789
        %v802 = vpack.c.b16 %v792, %v791
        %v803 = vpack.c.b16 %v794, %v793
        %v804 = vpack.c.b16 %v796, %v795
        %813 = vmatpush.bf16.msra.mxu0 %v804
        %814 = vmatpush.bf16.msra.mxu0 %v803
        %815 = vmatpush.bf16.msra.mxu0 %v802
        %816 = vmatpush.bf16.msra.mxu0 %v801
        %817 = vmatpush.bf16.msra.mxu0 %v800
        %818 = vmatpush.bf16.msra.mxu0 %v799
        %819 = vmatpush.bf16.msra.mxu0 %v798
        %820 = vmatpush.bf16.msra.mxu0 %v797
        %821 = vmatmul.bf16.gmra.mxu0 %v743
        %v822 = vpop.f32.mrf.mxu0
        %v823 = vadd.f32 %v763, %v822
        %v824 = vpop.f32.mrf.mxu0
        %v825 = vadd.f32 %v763, %v824
        %826 = vmatmul.bf16.gmra.mxu0 %v744
        %v827 = vpop.f32.mrf.mxu0
        %v828 = vadd.f32 %v763, %v827
        %v829 = vpop.f32.mrf.mxu0
        %v830 = vadd.f32 %v763, %v829
        %831 = vdwg.mxu0
        %v832 = vmax.f32 %v823, 0.0
        %v833 = vmax.f32 %v825, 0.0
        %v834 = vmax.f32 %v828, 0.0
        %v835 = vmax.f32 %v830, 0.0
        %836 = vst [vmem:[%s624] sm:$0xff] %v832
        %837 = vst [vmem:[%s624 + $0x8] sm:$0xff] %v833
        %838 = vst [vmem:[%s624 + $0x10] sm:$0xff] %v834
        %839 = vst [vmem:[%s624 + $0x18] sm:$0xff] %v835
        %v840 = vpack.c.bf16 %v833, %v832
        %v841 = vpack.c.bf16 %v835, %v834
        %v842 = vld [vmem:[#allocation2] sm:$0xf]
        %v843 = vld [vmem:[#allocation2 + $0x4] sm:$0xf]
        %v844 = vld [vmem:[#allocation2 + $0x8] sm:$0xf]
        %v845 = vld [vmem:[#allocation2 + $0xc] sm:$0xf]
        %v846 = vld [vmem:[#allocation2 + $0x10] sm:$0xf]
        %v847 = vld [vmem:[#allocation2 + $0x14] sm:$0xf]
        %v848 = vld [vmem:[#allocation2 + $0x18] sm:$0xf]
        %v849 = vld [vmem:[#allocation2 + $0x1c] sm:$0xf]
        %v850 = vld [vmem:[#allocation2 + $0x20] sm:$0xf]
        %v851 = vld [vmem:[#allocation2 + $0x24] sm:$0xf]
        %v852 = vld [vmem:[#allocation2 + $0x28] sm:$0xf]
        %v853 = vld [vmem:[#allocation2 + $0x2c] sm:$0xf]
        %v854 = vld [vmem:[#allocation2 + $0x30] sm:$0xf]
        %v855 = vld [vmem:[#allocation2 + $0x34] sm:$0xf]
        %v856 = vld [vmem:[#allocation2 + $0x38] sm:$0xf]
        %v857 = vld [vmem:[#allocation2 + $0x3c] sm:$0xf]
        %v858 = vld [vmem:[%s6] sm:$0x1]
        %v860 = vperm.slane %v858, 0
        %v878 = vunpack.c.l.b16 %v842
        %v879 = vunpack.c.l.b16 %v843
        %v880 = vunpack.c.l.b16 %v844
        %v881 = vunpack.c.l.b16 %v845
        %v882 = vunpack.c.l.b16 %v846
        %v883 = vunpack.c.l.b16 %v847
        %v884 = vunpack.c.l.b16 %v848
        %v885 = vunpack.c.l.b16 %v849
        %v886 = vunpack.c.l.b16 %v850
        %v887 = vunpack.c.l.b16 %v851
        %v888 = vunpack.c.l.b16 %v852
        %v889 = vunpack.c.l.b16 %v853
        %v890 = vunpack.c.l.b16 %v854
        %v891 = vunpack.c.l.b16 %v855
        %v892 = vunpack.c.l.b16 %v856
        %v893 = vunpack.c.l.b16 %v857
        %v894 = vpack.c.b16 %v879, %v878
        %v895 = vpack.c.b16 %v881, %v880
        %v896 = vpack.c.b16 %v883, %v882
        %v897 = vpack.c.b16 %v885, %v884
        %v898 = vpack.c.b16 %v887, %v886
        %v899 = vpack.c.b16 %v889, %v888
        %v900 = vpack.c.b16 %v891, %v890
        %v901 = vpack.c.b16 %v893, %v892
        %910 = vmatpush.bf16.msra.mxu0 %v901
        %911 = vmatpush.bf16.msra.mxu0 %v900
        %912 = vmatpush.bf16.msra.mxu0 %v899
        %913 = vmatpush.bf16.msra.mxu0 %v898
        %914 = vmatpush.bf16.msra.mxu0 %v897
        %915 = vmatpush.bf16.msra.mxu0 %v896
        %916 = vmatpush.bf16.msra.mxu0 %v895
        %917 = vmatpush.bf16.msra.mxu0 %v894
        %918 = vmatmul.bf16.gmra.mxu0 %v840
        %v919 = vpop.f32.mrf.mxu0
        %v920 = vadd.f32 %v860, %v919
        %v921 = vpop.f32.mrf.mxu0
        %v922 = vadd.f32 %v860, %v921
        %923 = vmatmul.bf16.gmra.mxu0 %v841
        %v924 = vpop.f32.mrf.mxu0
        %v925 = vadd.f32 %v860, %v924
        %v926 = vpop.f32.mrf.mxu0
        %v927 = vadd.f32 %v860, %v926
        %928 = vdwg.mxu0
        %929 = vst [vmem:[%s630] sm:$0xff] %v920
        %930 = vst [vmem:[%s630 + $0x8] sm:$0xff] %v922
        %931 = vst [vmem:[%s630 + $0x10] sm:$0xff] %v925
        %932 = vst [vmem:[%s630 + $0x18] sm:$0xff] %v927
        %v933 = vpack.c.bf16 %v922, %v920
        %v934 = vpack.c.bf16 %v927, %v925
        %v935 = vld [vmem:[#allocation4] sm:$0xf]
        %v936 = vld [vmem:[#allocation4 + $0x4] sm:$0xf]
        %v937 = vld [vmem:[#allocation4 + $0x8] sm:$0xf]
        %v938 = vld [vmem:[#allocation4 + $0xc] sm:$0xf]
        %v939 = vld [vmem:[#allocation4 + $0x10] sm:$0xf]
        %v940 = vld [vmem:[#allocation4 + $0x14] sm:$0xf]
        %v941 = vld [vmem:[#allocation4 + $0x18] sm:$0xf]
        %v942 = vld [vmem:[#allocation4 + $0x1c] sm:$0xf]
        %v943 = vld [vmem:[#allocation4 + $0x20] sm:$0xf]
        %v944 = vld [vmem:[#allocation4 + $0x24] sm:$0xf]
        %v945 = vld [vmem:[#allocation4 + $0x28] sm:$0xf]
        %v946 = vld [vmem:[#allocation4 + $0x2c] sm:$0xf]
        %v947 = vld [vmem:[#allocation4 + $0x30] sm:$0xf]
        %v948 = vld [vmem:[#allocation4 + $0x34] sm:$0xf]
        %v949 = vld [vmem:[#allocation4 + $0x38] sm:$0xf]
        %v950 = vld [vmem:[#allocation4 + $0x3c] sm:$0xf]
        %v951 = vld [vmem:[%s8] sm:$0x1]
        %v953 = vperm.slane %v951, 0
        %v971 = vunpack.c.l.b16 %v935
        %v972 = vunpack.c.l.b16 %v936
        %v973 = vunpack.c.l.b16 %v937
        %v974 = vunpack.c.l.b16 %v938
        %v975 = vunpack.c.l.b16 %v939
        %v976 = vunpack.c.l.b16 %v940
        %v977 = vunpack.c.l.b16 %v941
        %v978 = vunpack.c.l.b16 %v942
        %v979 = vunpack.c.l.b16 %v943
        %v980 = vunpack.c.l.b16 %v944
        %v981 = vunpack.c.l.b16 %v945
        %v982 = vunpack.c.l.b16 %v946
        %v983 = vunpack.c.l.b16 %v947
        %v984 = vunpack.c.l.b16 %v948
        %v985 = vunpack.c.l.b16 %v949
        %v986 = vunpack.c.l.b16 %v950
        %v987 = vpack.c.b16 %v972, %v971
        %v988 = vpack.c.b16 %v974, %v973
        %v989 = vpack.c.b16 %v976, %v975
        %v990 = vpack.c.b16 %v978, %v977
        %v991 = vpack.c.b16 %v980, %v979
        %v992 = vpack.c.b16 %v982, %v981
        %v993 = vpack.c.b16 %v984, %v983
        %v994 = vpack.c.b16 %v986, %v985
        %1003 = vmatpush.bf16.msra.mxu0 %v994
        %1004 = vmatpush.bf16.msra.mxu0 %v993
        %1005 = vmatpush.bf16.msra.mxu0 %v992
        %1006 = vmatpush.bf16.msra.mxu0 %v991
        %1007 = vmatpush.bf16.msra.mxu0 %v990
        %1008 = vmatpush.bf16.msra.mxu0 %v989
        %1009 = vmatpush.bf16.msra.mxu0 %v988
        %1010 = vmatpush.bf16.msra.mxu0 %v987
        %1011 = vmatmul.bf16.gmra.mxu0 %v933
        %v1012 = vpop.f32.mrf.mxu0
        %v1013 = vadd.f32 %v953, %v1012
        %v1014 = vpop.f32.mrf.mxu0
        %v1015 = vadd.f32 %v953, %v1014
        %1016 = vmatmul.bf16.gmra.mxu0 %v934
        %v1017 = vpop.f32.mrf.mxu0
        %v1018 = vadd.f32 %v953, %v1017
        %v1019 = vpop.f32.mrf.mxu0
        %v1020 = vadd.f32 %v953, %v1019
        %1021 = vdwg.mxu0
        %v1022 = vmax.f32 %v1013, 0.0
        %v1023 = vmax.f32 %v1015, 0.0
        %v1024 = vmax.f32 %v1018, 0.0
        %v1025 = vmax.f32 %v1020, 0.0
        %v1026 = vpack.c.bf16 %v1023, %v1022
        %v1027 = vpack.c.bf16 %v1025, %v1024
        %v1028 = vld [vmem:[#allocation6] sm:$0xf]
        %v1029 = vld [vmem:[#allocation6 + $0x4] sm:$0xf]
        %v1030 = vld [vmem:[#allocation6 + $0x8] sm:$0xf]
        %v1031 = vld [vmem:[#allocation6 + $0xc] sm:$0xf]
        %v1032 = vld [vmem:[#allocation6 + $0x10] sm:$0xf]
        %v1033 = vld [vmem:[#allocation6 + $0x14] sm:$0xf]
        %v1034 = vld [vmem:[#allocation6 + $0x18] sm:$0xf]
        %v1035 = vld [vmem:[#allocation6 + $0x1c] sm:$0xf]
        %v1036 = vld [vmem:[#allocation6 + $0x20] sm:$0xf]
        %v1037 = vld [vmem:[#allocation6 + $0x24] sm:$0xf]
        %v1038 = vld [vmem:[#allocation6 + $0x28] sm:$0xf]
        %v1039 = vld [vmem:[#allocation6 + $0x2c] sm:$0xf]
        %v1040 = vld [vmem:[#allocation6 + $0x30] sm:$0xf]
        %v1041 = vld [vmem:[#allocation6 + $0x34] sm:$0xf]
        %v1042 = vld [vmem:[#allocation6 + $0x38] sm:$0xf]
        %v1043 = vld [vmem:[#allocation6 + $0x3c] sm:$0xf]
        %v1044 = vld [vmem:[%s10] sm:$0x1]
        %v1046 = vperm.slane %v1044, 0
        %v1064 = vunpack.c.l.b16 %v1028
        %v1065 = vunpack.c.l.b16 %v1029
        %v1066 = vunpack.c.l.b16 %v1030
        %v1067 = vunpack.c.l.b16 %v1031
        %v1068 = vunpack.c.l.b16 %v1032
        %v1069 = vunpack.c.l.b16 %v1033
        %v1070 = vunpack.c.l.b16 %v1034
        %v1071 = vunpack.c.l.b16 %v1035
        %v1072 = vunpack.c.l.b16 %v1036
        %v1073 = vunpack.c.l.b16 %v1037
        %v1074 = vunpack.c.l.b16 %v1038
        %v1075 = vunpack.c.l.b16 %v1039
        %v1076 = vunpack.c.l.b16 %v1040
        %v1077 = vunpack.c.l.b16 %v1041
        %v1078 = vunpack.c.l.b16 %v1042
        %v1079 = vunpack.c.l.b16 %v1043
        %v1080 = vpack.c.b16 %v1065, %v1064
        %v1081 = vpack.c.b16 %v1067, %v1066
        %v1082 = vpack.c.b16 %v1069, %v1068
        %v1083 = vpack.c.b16 %v1071, %v1070
        %v1084 = vpack.c.b16 %v1073, %v1072
        %v1085 = vpack.c.b16 %v1075, %v1074
        %v1086 = vpack.c.b16 %v1077, %v1076
        %v1087 = vpack.c.b16 %v1079, %v1078
        %1096 = vmatpush.bf16.msra.mxu0 %v1087
        %1097 = vmatpush.bf16.msra.mxu0 %v1086
        %1098 = vmatpush.bf16.msra.mxu0 %v1085
        %1099 = vmatpush.bf16.msra.mxu0 %v1084
        %1100 = vmatpush.bf16.msra.mxu0 %v1083
        %1101 = vmatpush.bf16.msra.mxu0 %v1082
        %1102 = vmatpush.bf16.msra.mxu0 %v1081
        %1103 = vmatpush.bf16.msra.mxu0 %v1080
        %1104 = vmatmul.bf16.gmra.mxu0 %v1026
        %v1105 = vpop.f32.mrf.mxu0
        %v1106 = vadd.f32 %v1046, %v1105
        %v1107 = vpop.f32.mrf.mxu0
        %v1108 = vadd.f32 %v1046, %v1107
        %1109 = vmatmul.bf16.gmra.mxu0 %v1027
        %v1110 = vpop.f32.mrf.mxu0
        %v1111 = vadd.f32 %v1046, %v1110
        %v1112 = vpop.f32.mrf.mxu0
        %v1113 = vadd.f32 %v1046, %v1112
        %1114 = vdwg.mxu0
        %v1115 = vmax.f32 %v1106, 0.0
        %v1116 = vmax.f32 %v1108, 0.0
        %v1117 = vmax.f32 %v1111, 0.0
        %v1118 = vmax.f32 %v1113, 0.0
        %v1119 = vpack.c.bf16 %v1116, %v1115
        %v1120 = vpack.c.bf16 %v1118, %v1117
        %v1121 = vld [vmem:[#allocation7] sm:$0xf]
        %v1122 = vld [vmem:[#allocation7 + $0x4] sm:$0xf]
        %v1123 = vld [vmem:[#allocation7 + $0x8] sm:$0xf]
        %v1124 = vld [vmem:[#allocation7 + $0xc] sm:$0xf]
        %v1125 = vld [vmem:[#allocation7 + $0x10] sm:$0xf]
        %v1126 = vld [vmem:[#allocation7 + $0x14] sm:$0xf]
        %v1127 = vld [vmem:[#allocation7 + $0x18] sm:$0xf]
        %v1128 = vld [vmem:[#allocation7 + $0x1c] sm:$0xf]
        %v1129 = vld [vmem:[#allocation7 + $0x20] sm:$0xf]
        %v1130 = vld [vmem:[#allocation7 + $0x24] sm:$0xf]
        %v1131 = vld [vmem:[#allocation7 + $0x28] sm:$0xf]
        %v1132 = vld [vmem:[#allocation7 + $0x2c] sm:$0xf]
        %v1133 = vld [vmem:[#allocation7 + $0x30] sm:$0xf]
        %v1134 = vld [vmem:[#allocation7 + $0x34] sm:$0xf]
        %v1135 = vld [vmem:[#allocation7 + $0x38] sm:$0xf]
        %v1136 = vld [vmem:[#allocation7 + $0x3c] sm:$0xf]
        %v1137 = vld [vmem:[%s12] sm:$0x1]
        %v1139 = vperm.slane %v1137, 0
        %v1157 = vunpack.c.l.b16 %v1121
        %v1158 = vunpack.c.l.b16 %v1122
        %v1159 = vunpack.c.l.b16 %v1123
        %v1160 = vunpack.c.l.b16 %v1124
        %v1161 = vunpack.c.l.b16 %v1125
        %v1162 = vunpack.c.l.b16 %v1126
        %v1163 = vunpack.c.l.b16 %v1127
        %v1164 = vunpack.c.l.b16 %v1128
        %v1165 = vunpack.c.l.b16 %v1129
        %v1166 = vunpack.c.l.b16 %v1130
        %v1167 = vunpack.c.l.b16 %v1131
        %v1168 = vunpack.c.l.b16 %v1132
        %v1169 = vunpack.c.l.b16 %v1133
        %v1170 = vunpack.c.l.b16 %v1134
        %v1171 = vunpack.c.l.b16 %v1135
        %v1172 = vunpack.c.l.b16 %v1136
        %v1173 = vpack.c.b16 %v1158, %v1157
        %v1174 = vpack.c.b16 %v1160, %v1159
        %v1175 = vpack.c.b16 %v1162, %v1161
        %v1176 = vpack.c.b16 %v1164, %v1163
        %v1177 = vpack.c.b16 %v1166, %v1165
        %v1178 = vpack.c.b16 %v1168, %v1167
        %v1179 = vpack.c.b16 %v1170, %v1169
        %v1180 = vpack.c.b16 %v1172, %v1171
        %1189 = vmatpush.bf16.msra.mxu0 %v1180
        %1190 = vmatpush.bf16.msra.mxu0 %v1179
        %1191 = vmatpush.bf16.msra.mxu0 %v1178
        %1192 = vmatpush.bf16.msra.mxu0 %v1177
        %1193 = vmatpush.bf16.msra.mxu0 %v1176
        %1194 = vmatpush.bf16.msra.mxu0 %v1175
        %1195 = vmatpush.bf16.msra.mxu0 %v1174
        %1196 = vmatpush.bf16.msra.mxu0 %v1173
        %1197 = vmatmul.bf16.gmra.mxu0 %v1119
        %v1198 = vpop.f32.mrf.mxu0
        %v1199 = vadd.f32 %v1139, %v1198
        %v1200 = vpop.f32.mrf.mxu0
        %v1201 = vadd.f32 %v1139, %v1200
        %1202 = vmatmul.bf16.gmra.mxu0 %v1120
        %v1203 = vpop.f32.mrf.mxu0
        %v1204 = vadd.f32 %v1139, %v1203
        %v1205 = vpop.f32.mrf.mxu0
        %v1206 = vadd.f32 %v1139, %v1205
        %1207 = vdwg.mxu0
        %1208 = vst [vmem:[%s612] sm:$0xff] %v1199
        %1209 = vst [vmem:[%s612 + $0x8] sm:$0xff] %v1201
        %1210 = vst [vmem:[%s612 + $0x10] sm:$0xff] %v1204
        %1211 = vst [vmem:[%s612 + $0x18] sm:$0xff] %v1206
        %s1212 = smul.u32 4, %s31
        %p1213 = scmp.lt.s32.totalorder %s1212, 7
        %s1214 = scalar_select %p1213, %s1212, 7
        %s1215 = smul.addr %s1214, 8
        %s1216 = scalar_lea.vmem %s13, %s1215
        %s1217 = smul.u32 4, %s31
        %p1218 = scmp.lt.s32.totalorder %s1217, 7
        %s1219 = scalar_select %p1218, %s1217, 7
        %s1220 = smul.addr %s1219, 8
        %s1221 = scalar_lea.vmem %s14, %s1220
        %s1222 = smul.u32 4, %s31
        %p1223 = scmp.lt.s32.totalorder %s1222, 7
        %s1224 = scalar_select %p1223, %s1222, 7
        %s1225 = smul.addr %s1224, 8
        %s1226 = scalar_lea.vmem %s15, %s1225
        %s1227 = smul.u32 4, %s31
        %p1228 = scmp.lt.s32.totalorder %s1227, 7
        %s1229 = scalar_select %p1228, %s1227, 7
        %s1230 = smul.addr %s1229, 8
        %s1231 = scalar_lea.vmem %s16, %s1230
        // Predicated region
        $region89: #{ae_forward.1} parent=71 // pred_check
          %p1232 = pneg %p327
        $region90: #{ae_forward.1} parent=71 // pred_check_branch
          %1234 = sbr.rel (%p1232) target = $region92
        $region91: #{ae_forward.1} parent=71 // pred_region
          %s1235 = smul.u32 4, %s31
        $region92: #{ae_forward.1} parent=71 // pred_fallthru
          _
        // Predicated region
        $region93: #{ae_forward.1} parent=71 // pred_check
          %p1236 = pneg %p353
        $region94: #{ae_forward.1} parent=71 // pred_check_branch
          %1238 = sbr.rel (%p1236) target = $region96
        $region95: #{ae_forward.1} parent=71 // pred_region
          %s1239 = smul.u32 4, %s31
        $region96: #{ae_forward.1} parent=71 // pred_fallthru
          _
        // Predicated region
        $region97: #{ae_forward.1} parent=71 // pred_check
          %p1240 = pneg %p379
        $region98: #{ae_forward.1} parent=71 // pred_check_branch
          %1242 = sbr.rel (%p1240) target = $region100
        $region99: #{ae_forward.1} parent=71 // pred_region
          %s1243 = smul.u32 4, %s31
        $region100: #{ae_forward.1} parent=71 // pred_fallthru
          _
        // Predicated region
        $region101: #{ae_forward.1} parent=71 // pred_check
          %p1244 = pneg %p405
        $region102: #{ae_forward.1} parent=71 // pred_check_branch
          %1246 = sbr.rel (%p1244) target = $region104
        $region103: #{ae_forward.1} parent=71 // pred_region
          %s1247 = smul.u32 4, %s31
        $region104: #{ae_forward.1} parent=71 // pred_fallthru
          _
      $region72: #{ae_forward.1} parent=5 // pred_fallthru
        _
      %p1248 = scmp.le.s32.totalorder 2, %s26
      // Predicated region
      $region105: #{ae_forward.1} parent=5 // pred_check
        %p1249 = pneg %p1248
      $region106: #{ae_forward.1} parent=5 // pred_check_branch
        %1251 = sbr.rel (%p1249) target = $region108
      $region107: #{ae_forward.1} parent=5 // pred_region
        %s1252 = ssub.s32 %s26, 2
        // Predicated region
        $region109: #{ae_forward.1} parent=107 // pred_check
          %p1253 = pneg %p333
        $region110: #{ae_forward.1} parent=107 // pred_check_branch
          %1255 = sbr.rel (%p1253) target = $region112
        $region111: #{ae_forward.1} parent=107 // pred_region
          %s1256 = smul.u32 4, %s32
          %p1257 = scmp.lt.s32.totalorder %s1256, 7
          %s1258 = scalar_select %p1257, %s1256, 7
          %s1259 = smul.addr %s1258, 8
          %s1260 = scalar_lea.vmem %s13, %s1259
        $region112: #{ae_forward.1} parent=107 // pred_fallthru
          _
        // Predicated region
        $region113: #{ae_forward.1} parent=107 // pred_check
          %p1261 = pneg %p359
        $region114: #{ae_forward.1} parent=107 // pred_check_branch
          %1263 = sbr.rel (%p1261) target = $region116
        $region115: #{ae_forward.1} parent=107 // pred_region
          %s1264 = smul.u32 4, %s32
          %p1265 = scmp.lt.s32.totalorder %s1264, 7
          %s1266 = scalar_select %p1265, %s1264, 7
          %s1267 = smul.addr %s1266, 8
          %s1268 = scalar_lea.vmem %s14, %s1267
        $region116: #{ae_forward.1} parent=107 // pred_fallthru
          _
        // Predicated region
        $region117: #{ae_forward.1} parent=107 // pred_check
          %p1269 = pneg %p385
        $region118: #{ae_forward.1} parent=107 // pred_check_branch
          %1271 = sbr.rel (%p1269) target = $region120
        $region119: #{ae_forward.1} parent=107 // pred_region
          %s1272 = smul.u32 4, %s32
          %p1273 = scmp.lt.s32.totalorder %s1272, 7
          %s1274 = scalar_select %p1273, %s1272, 7
          %s1275 = smul.addr %s1274, 8
          %s1276 = scalar_lea.vmem %s15, %s1275
        $region120: #{ae_forward.1} parent=107 // pred_fallthru
          _
        // Predicated region
        $region121: #{ae_forward.1} parent=107 // pred_check
          %p1277 = pneg %p411
        $region122: #{ae_forward.1} parent=107 // pred_check_branch
          %1279 = sbr.rel (%p1277) target = $region124
        $region123: #{ae_forward.1} parent=107 // pred_region
          %s1280 = smul.u32 4, %s32
          %p1281 = scmp.lt.s32.totalorder %s1280, 7
          %s1282 = scalar_select %p1281, %s1280, 7
          %s1283 = smul.addr %s1282, 8
          %s1284 = scalar_lea.vmem %s16, %s1283
        $region124: #{ae_forward.1} parent=107 // pred_fallthru
          _
      $region108: #{ae_forward.1} parent=5 // pred_fallthru
        _
    $region6: #{ae_forward.1} parent=1 // loop_footer
      %s30 = sadd.s32 1, %s26
    $region7: #{ae_forward.1} parent=1 // loop_footer_branch
      %25 = sbr.rel target = $region3
    $region8: #{ae_forward.1} parent=1 // loop_exit
      _
    %1285 = vsyncpa [#allocation3], 1
    %s1286 = scalar_lea.sflag [#allocation3], 1
    %1287 = vsyncpa %s1286, 1
    %1288 = vsyncpa [#allocation5], 1
    %1289 = vsyncpa [#allocation8], 1

</llo_original>
